<compile_context>
chip_gen: v5e
topology: v5e:2x2
jax: 0.10.0
libtpu: 0.0.40
codegen_flags: <defaults>
</compile_context>

<pallas_src>
import functools

import numpy as np

import jax
import jax.numpy as jnp
from jax import lax
from jax.experimental import pallas as pl
from jax.experimental.pallas import tpu as pltpu

_EPS = np.float32(1e-7)                             # torch .clamp(min=1e-7, max=1.0)
_LOG_EPS = np.float32(np.log(np.float32(1e-7)))     # clamp in log domain


def _project(x, w1, b1, w2, b2):
    """Linear -> ReLU -> Linear. x/w* in the matmul dtype, f32 accumulation."""
    h = jnp.dot(x, w1, preferred_element_type=jnp.float32) + b1
    h = jnp.maximum(h, 0.0).astype(w2.dtype)
    return jnp.dot(h, w2, preferred_element_type=jnp.float32) + b2


def _x1_logp_kernel(x1_ref, w1_ref, b1_ref, w2_ref, b2_ref, logp1_ref):
    """log(clamp(softmax(project(x1)))) for one tile of x1 rows (computed once)."""
    z = _project(x1_ref[...], w1_ref[...], b1_ref[...], w2_ref[...], b2_ref[...])
    m = jnp.max(z, axis=-1, keepdims=True)
    zs = z - m
    s = jnp.sum(jnp.exp(zs), axis=-1, keepdims=True)
    logp = zs - jnp.log(s)                               # log-softmax
    logp1_ref[...] = jnp.clip(logp, _LOG_EPS, 0.0)


def _kl_kernel(x0_ref, w1_ref, b1_ref, w2_ref, b2_ref, logp1_ref, out_ref,
               p0_ref, ent0_ref):
    """One (TM, TN) tile of KL_01 = ce01 - entropy0."""
    # x0-side projection / softmax / entropy: once per b0 tile, kept resident
    # in VMEM scratch across all b1 tiles (innermost "arbitrary" j axis).
    @pl.when(pl.program_id(1) == 0)
    def _():
        z = _project(x0_ref[...], w1_ref[...], b1_ref[...], w2_ref[...],
                     b2_ref[...])
        m = jnp.max(z, axis=-1, keepdims=True)
        zs = z - m
        e = jnp.exp(zs)
        s = jnp.sum(e, axis=-1, keepdims=True)
        logp = jnp.clip(zs - jnp.log(s), _LOG_EPS, 0.0)  # log(clamped softmax)
        p = jnp.clip(e * (1.0 / s), _EPS, 1.0)           # clamped softmax
        p0_ref[...] = p
        ent0_ref[...] = jnp.sum(p * logp, axis=-1, keepdims=True)

    # ce01[n, m] = sum_c p0[n, c] * logp1[m, c]  -- transpose-free contraction.
    ce01 = lax.dot_general(
        p0_ref[...], logp1_ref[...],
        dimension_numbers=(((1,), (1,)), ((), ())),
        preferred_element_type=jnp.float32)
    out_ref[...] = ce01 - ent0_ref[...]


def _round_up(n, m):
    return ((n + m - 1) // m) * m


def _pad_rows(x, rows):
    pad = rows - x.shape[0]
    return x if pad == 0 else jnp.pad(x, ((0, pad), (0, 0)))


def _vmem_limit_bytes():
    # Generation-aware: never request the whole physical VMEM (v7x has only
    # 64 MiB per TensorCore); leave headroom for compiler scratch / buffers.
    cap = 64 << 20
    try:
        cap = pltpu.get_tpu_info().vmem_capacity_bytes
    except Exception:
        pass
    return int(min(48 << 20, (cap * 3) // 4))


@functools.partial(jax.jit, static_argnames=("tm", "tn", "matmul_dtype"))
def pseudo_attention(x0, x1, w1, b1, w2, b2, *, tm=128, tn=128,
                     matmul_dtype=jnp.bfloat16):
    """x0:(b0,in) x1:(b1,in)  w1:(in,emb) b1:(1,emb)  w2:(emb,emb) b2:(1,emb)."""
    b0, in_dim = x0.shape
    b1_rows = x1.shape[0]
    emb = w1.shape[1]

    b0p = _round_up(b0, tm)
    b1p = _round_up(b1_rows, tn)

    # Pad batch dims so every output tile is (tm, tn) with a 128-lane-dense
    # last axis (unmasked full-vreg stores); pad rows are zeros and their
    # (finite) results are sliced off at the end.
    x0p = _pad_rows(x0, b0p).astype(matmul_dtype)
    x1p = _pad_rows(x1, b1p).astype(matmul_dtype)
    w1c = w1.astype(matmul_dtype)
    w2c = w2.astype(matmul_dtype)
    b1f = b1.astype(jnp.float32)
    b2f = b2.astype(jnp.float32)

    vmem_limit = _vmem_limit_bytes()

    # ---- pass 1: x1-side clamped log-softmax, computed exactly once --------
    logp1 = pl.pallas_call(
        _x1_logp_kernel,
        out_shape=jax.ShapeDtypeStruct((b1p, emb), jnp.float32),
        grid=(b1p // tn,),
        in_specs=[
            pl.BlockSpec((tn, in_dim), lambda i: (i, 0)),
            pl.BlockSpec((in_dim, emb), lambda i: (0, 0)),
            pl.BlockSpec((1, emb), lambda i: (0, 0)),
            pl.BlockSpec((emb, emb), lambda i: (0, 0)),
            pl.BlockSpec((1, emb), lambda i: (0, 0)),
        ],
        out_specs=pl.BlockSpec((tn, emb), lambda i: (i, 0)),
        compiler_params=pltpu.CompilerParams(
            dimension_semantics=("parallel",),
            vmem_limit_bytes=vmem_limit),
    )(x1p, w1c, b1f, w2c, b2f)

    # ---- pass 2: tiled KL over (b0 tiles, b1 tiles) -------------------------
    kl = pl.pallas_call(
        _kl_kernel,
        out_shape=jax.ShapeDtypeStruct((b0p, b1p), jnp.float32),
        grid=(b0p // tm, b1p // tn),
        in_specs=[
            pl.BlockSpec((tm, in_dim), lambda i, j: (i, 0)),
            pl.BlockSpec((in_dim, emb), lambda i, j: (0, 0)),
            pl.BlockSpec((1, emb), lambda i, j: (0, 0)),
            pl.BlockSpec((emb, emb), lambda i, j: (0, 0)),
            pl.BlockSpec((1, emb), lambda i, j: (0, 0)),
            pl.BlockSpec((tn, emb), lambda i, j: (j, 0)),
        ],
        out_specs=pl.BlockSpec((tm, tn), lambda i, j: (i, j)),
        scratch_shapes=[pltpu.VMEM((tm, emb), jnp.float32),   # p0 tile
                        pltpu.VMEM((tm, 1), jnp.float32)],    # entropy0 tile
        compiler_params=pltpu.CompilerParams(
            # b0 tiles are independent -> megacore-shardable on v7x;
            # b1 axis carries the per-tile scratch -> arbitrary.
            dimension_semantics=("parallel", "arbitrary"),
            vmem_limit_bytes=vmem_limit),
    )(x0p, w1c, b1f, w2c, b2f, logp1)

    return kl[:b0, :b1_rows]


def _reference(x0, x1, w1, b1, w2, b2, matmul_dtype=jnp.bfloat16):
    """Direct port of the torch module (same bf16 projection cast as kernel)."""
    w1c = w1.astype(matmul_dtype)
    w2c = w2.astype(matmul_dtype)

    def project(x):
        h = jnp.dot(x.astype(matmul_dtype), w1c,
                    preferred_element_type=jnp.float32) + b1
        h = jnp.maximum(h, 0.0)
        return jnp.dot(h.astype(matmul_dtype), w2c,
                       preferred_element_type=jnp.float32) + b2

    def softmax_clamp(z):
        return jnp.clip(jax.nn.softmax(z, axis=-1), 1e-7, 1.0)

    l0 = softmax_clamp(project(x0))
    l1 = softmax_clamp(project(x1))
    entropy0 = jnp.einsum('bc,bc->b', l0, jnp.log(l0))
    ce01 = jnp.einsum('nc,mc->nm', l0, jnp.log(l1))
    return ce01 - entropy0[:, None]


if __name__ == "__main__":
    # Small shapes consistent with the module (module default 512->256, scaled down).
    B0, B1 = 8, 8
    INPUT_DIM, EMBED_DIM = 128, 128

    key = jax.random.PRNGKey(0)
    k_x0, k_x1, k_w1, k_b1, k_w2, k_b2 = jax.random.split(key, 6)

    x0 = jax.random.normal(k_x0, (B0, INPUT_DIM), dtype=jnp.float32)
    x1 = jax.random.normal(k_x1, (B1, INPUT_DIM), dtype=jnp.float32)

    # Linear weights stored pre-transposed as [in, out]; biases as [1, out].
    w1 = jax.random.normal(k_w1, (INPUT_DIM, EMBED_DIM), dtype=jnp.float32) * (
        1.0 / np.sqrt(INPUT_DIM))
    b1 = jax.random.normal(k_b1, (1, EMBED_DIM), dtype=jnp.float32) * 0.01
    w2 = jax.random.normal(k_w2, (EMBED_DIM, EMBED_DIM), dtype=jnp.float32) * (
        1.0 / np.sqrt(EMBED_DIM))
    b2 = jax.random.normal(k_b2, (1, EMBED_DIM), dtype=jnp.float32) * 0.01

    out = jax.block_until_ready(pseudo_attention(x0, x1, w1, b1, w2, b2))
    ref = jax.block_until_ready(_reference(x0, x1, w1, b1, w2, b2))

    # Tolerance accounts for the bf16 projection fast path (both sides use it);
    # pass matmul_dtype=jnp.float32 to both for exact f32 module semantics.
    np.testing.assert_allclose(np.asarray(out), np.asarray(ref),
                               rtol=1e-4, atol=1e-4)

    print("KERNEL_OK")
</pallas_src>

<mosaic_0001>
module attributes {stable_mosaic.version = 11 : i64} {
  func.func @_x1_logp_kernel(%arg0: i32, %arg1: memref<128x128xbf16, #tpu.memory_space<vmem>>, %arg2: memref<128x128xbf16, #tpu.memory_space<vmem>>, %arg3: memref<1x128xf32, #tpu.memory_space<vmem>>, %arg4: memref<128x128xbf16, #tpu.memory_space<vmem>>, %arg5: memref<1x128xf32, #tpu.memory_space<vmem>>, %arg6: memref<128x128xf32, #tpu.memory_space<vmem>>) attributes {dimension_semantics = [#tpu.dimension_semantics<parallel>], iteration_bounds = array<i64: 1>, scalar_prefetch = 0 : i64, scratch_operands = 0 : i64, tpu.core_type = #tpu.core_type<tc>, window_params = [{transform_indices = @transform_0, window_bounds = array<i64: 128, 128>}, {pipeline_mode = #tpu.pipeline_mode<synchronous>, transform_indices = @transform_1, window_bounds = array<i64: 128, 128>}, {pipeline_mode = #tpu.pipeline_mode<synchronous>, transform_indices = @transform_2, window_bounds = array<i64: 1, 128>}, {pipeline_mode = #tpu.pipeline_mode<synchronous>, transform_indices = @transform_3, window_bounds = array<i64: 128, 128>}, {pipeline_mode = #tpu.pipeline_mode<synchronous>, transform_indices = @transform_4, window_bounds = array<i64: 1, 128>}, {transform_indices = @transform_5, window_bounds = array<i64: 128, 128>}]} {
    %c0 = arith.constant 0 : index
    %c0_0 = arith.constant 0 : index
    %0 = vector.load %arg1[%c0, %c0_0] : memref<128x128xbf16, #tpu.memory_space<vmem>>, vector<128x128xbf16>
    %c0_1 = arith.constant 0 : index
    %c0_2 = arith.constant 0 : index
    %1 = vector.load %arg2[%c0_1, %c0_2] : memref<128x128xbf16, #tpu.memory_space<vmem>>, vector<128x128xbf16>
    %c0_3 = arith.constant 0 : index
    %c0_4 = arith.constant 0 : index
    %2 = vector.load %arg3[%c0_3, %c0_4] : memref<1x128xf32, #tpu.memory_space<vmem>>, vector<1x128xf32>
    %c0_5 = arith.constant 0 : index
    %c0_6 = arith.constant 0 : index
    %3 = vector.load %arg4[%c0_5, %c0_6] : memref<128x128xbf16, #tpu.memory_space<vmem>>, vector<128x128xbf16>
    %c0_7 = arith.constant 0 : index
    %c0_8 = arith.constant 0 : index
    %4 = vector.load %arg5[%c0_7, %c0_8] : memref<1x128xf32, #tpu.memory_space<vmem>>, vector<1x128xf32>
    %cst = arith.constant dense<0.000000e+00> : vector<128x128xf32>
    %5 = tpu.matmul %0, %1, %cst {dimension_numbers = #tpu.dot_dimension_numbers<[1], [0], [0], [1], [0, 0, 1, 1], [], []>} : vector<128x128xbf16>, vector<128x128xbf16>, vector<128x128xf32> -> vector<128x128xf32>
    %6 = vector.broadcast %2 : vector<1x128xf32> to vector<128x128xf32>
    %7 = arith.addf %5, %6 : vector<128x128xf32>
    %cst_9 = arith.constant 0.000000e+00 : f32
    %8 = vector.broadcast %cst_9 : f32 to vector<128x128xf32>
    %9 = arith.maximumf %7, %8 : vector<128x128xf32>
    %10 = arith.truncf %9 : vector<128x128xf32> to vector<128x128xbf16>
    %cst_10 = arith.constant dense<0.000000e+00> : vector<128x128xf32>
    %11 = tpu.matmul %10, %3, %cst_10 {dimension_numbers = #tpu.dot_dimension_numbers<[1], [0], [0], [1], [0, 0, 1, 1], [], []>} : vector<128x128xbf16>, vector<128x128xbf16>, vector<128x128xf32> -> vector<128x128xf32>
    %12 = vector.broadcast %4 : vector<1x128xf32> to vector<128x128xf32>
    %13 = arith.addf %11, %12 : vector<128x128xf32>
    %cst_11 = arith.constant dense<0xFF800000> : vector<128xf32>
    %14 = vector.multi_reduction <maximumf>, %13, %cst_11 [1] : vector<128x128xf32> to vector<128xf32>
    %15 = vector.shape_cast %14 : vector<128xf32> to vector<128x1xf32>
    %16 = vector.broadcast %15 : vector<128x1xf32> to vector<128x128xf32>
    %17 = arith.subf %13, %16 : vector<128x128xf32>
    %18 = math.exp %17 : vector<128x128xf32>
    %cst_12 = arith.constant dense<0.000000e+00> : vector<128xf32>
    %19 = vector.multi_reduction <add>, %18, %cst_12 [1] : vector<128x128xf32> to vector<128xf32>
    %20 = vector.shape_cast %19 : vector<128xf32> to vector<128x1xf32>
    %21 = math.log %20 : vector<128x1xf32>
    %22 = vector.broadcast %21 : vector<128x1xf32> to vector<128x128xf32>
    %23 = arith.subf %17, %22 : vector<128x128xf32>
    %cst_13 = arith.constant -16.1180954 : f32
    %cst_14 = arith.constant 0.000000e+00 : f32
    %24 = vector.broadcast %cst_13 : f32 to vector<128x128xf32>
    %25 = arith.maximumf %24, %23 : vector<128x128xf32>
    %26 = vector.broadcast %cst_14 : f32 to vector<128x128xf32>
    %27 = arith.minimumf %26, %25 : vector<128x128xf32>
    %c0_15 = arith.constant 0 : index
    %c0_16 = arith.constant 0 : index
    %28 = vector.load %arg6[%c0_15, %c0_16] : memref<128x128xf32, #tpu.memory_space<vmem>>, vector<128x128xf32>
    tpu.vector_store %arg6[%c0_15, %c0_16], %27 {strides = array<i32>} : memref<128x128xf32, #tpu.memory_space<vmem>>, vector<128x128xf32>,
    return
  }
  func.func @transform_0(%arg0: i32) -> (i32, i32) {
    %c0_i32 = arith.constant 0 : i32
    %c0_i32_0 = arith.constant 0 : i32
    return %arg0, %c0_i32 : i32, i32
  }
  func.func @transform_1(%arg0: i32) -> (i32, i32) {
    %c0_i32 = arith.constant 0 : i32
    %c0_i32_0 = arith.constant 0 : i32
    %c0_i32_1 = arith.constant 0 : i32
    return %c0_i32, %c0_i32_0 : i32, i32
  }
  func.func @transform_2(%arg0: i32) -> (i32, i32) {
    %c0_i32 = arith.constant 0 : i32
    %c0_i32_0 = arith.constant 0 : i32
    %c0_i32_1 = arith.constant 0 : i32
    return %c0_i32, %c0_i32_0 : i32, i32
  }
  func.func @transform_3(%arg0: i32) -> (i32, i32) {
    %c0_i32 = arith.constant 0 : i32
    %c0_i32_0 = arith.constant 0 : i32
    %c0_i32_1 = arith.constant 0 : i32
    return %c0_i32, %c0_i32_0 : i32, i32
  }
  func.func @transform_4(%arg0: i32) -> (i32, i32) {
    %c0_i32 = arith.constant 0 : i32
    %c0_i32_0 = arith.constant 0 : i32
    %c0_i32_1 = arith.constant 0 : i32
    return %c0_i32, %c0_i32_0 : i32, i32
  }
  func.func @transform_5(%arg0: i32) -> (i32, i32) {
    %c0_i32 = arith.constant 0 : i32
    %c0_i32_0 = arith.constant 0 : i32
    return %arg0, %c0_i32 : i32, i32
  }
}

module attributes {stable_mosaic.version = 11 : i64} {
  func.func @_kl_kernel(%arg0: i32, %arg1: i32, %arg2: memref<128x128xbf16, #tpu.memory_space<vmem>>, %arg3: memref<128x128xbf16, #tpu.memory_space<vmem>>, %arg4: memref<1x128xf32, #tpu.memory_space<vmem>>, %arg5: memref<128x128xbf16, #tpu.memory_space<vmem>>, %arg6: memref<1x128xf32, #tpu.memory_space<vmem>>, %arg7: memref<128x128xf32, #tpu.memory_space<vmem>>, %arg8: memref<128x128xf32, #tpu.memory_space<vmem>>, %arg9: memref<128x128xf32, #tpu.memory_space<vmem>>, %arg10: memref<128x1xf32, #tpu.memory_space<vmem>>) attributes {dimension_semantics = [#tpu.dimension_semantics<parallel>, #tpu.dimension_semantics<arbitrary>], iteration_bounds = array<i64: 1, 1>, scalar_prefetch = 0 : i64, scratch_operands = 2 : i64, tpu.core_type = #tpu.core_type<tc>, window_params = [{transform_indices = @transform_0, window_bounds = array<i64: 128, 128>}, {pipeline_mode = #tpu.pipeline_mode<synchronous>, transform_indices = @transform_1, window_bounds = array<i64: 128, 128>}, {pipeline_mode = #tpu.pipeline_mode<synchronous>, transform_indices = @transform_2, window_bounds = array<i64: 1, 128>}, {pipeline_mode = #tpu.pipeline_mode<synchronous>, transform_indices = @transform_3, window_bounds = array<i64: 128, 128>}, {pipeline_mode = #tpu.pipeline_mode<synchronous>, transform_indices = @transform_4, window_bounds = array<i64: 1, 128>}, {transform_indices = @transform_5, window_bounds = array<i64: 128, 128>}, {transform_indices = @transform_6, window_bounds = array<i64: 128, 128>}]} {
    %c0_i32 = arith.constant 0 : i32
    %0 = arith.cmpi eq, %arg1, %c0_i32 : i32
    %1 = arith.extui %0 : i1 to i32
    %c0_i32_0 = arith.constant 0 : i32
    %2 = arith.cmpi ne, %1, %c0_i32_0 : i32
    scf.if %2 {
      %c0_8 = arith.constant 0 : index
      %c0_9 = arith.constant 0 : index
      %10 = vector.load %arg2[%c0_8, %c0_9] : memref<128x128xbf16, #tpu.memory_space<vmem>>, vector<128x128xbf16>
      %c0_10 = arith.constant 0 : index
      %c0_11 = arith.constant 0 : index
      %11 = vector.load %arg3[%c0_10, %c0_11] : memref<128x128xbf16, #tpu.memory_space<vmem>>, vector<128x128xbf16>
      %c0_12 = arith.constant 0 : index
      %c0_13 = arith.constant 0 : index
      %12 = vector.load %arg4[%c0_12, %c0_13] : memref<1x128xf32, #tpu.memory_space<vmem>>, vector<1x128xf32>
      %c0_14 = arith.constant 0 : index
      %c0_15 = arith.constant 0 : index
      %13 = vector.load %arg5[%c0_14, %c0_15] : memref<128x128xbf16, #tpu.memory_space<vmem>>, vector<128x128xbf16>
      %c0_16 = arith.constant 0 : index
      %c0_17 = arith.constant 0 : index
      %14 = vector.load %arg6[%c0_16, %c0_17] : memref<1x128xf32, #tpu.memory_space<vmem>>, vector<1x128xf32>
      %cst_18 = arith.constant dense<0.000000e+00> : vector<128x128xf32>
      %15 = tpu.matmul %10, %11, %cst_18 {dimension_numbers = #tpu.dot_dimension_numbers<[1], [0], [0], [1], [0, 0, 1, 1], [], []>} : vector<128x128xbf16>, vector<128x128xbf16>, vector<128x128xf32> -> vector<128x128xf32>
      %16 = vector.broadcast %12 : vector<1x128xf32> to vector<128x128xf32>
      %17 = arith.addf %15, %16 : vector<128x128xf32>
      %cst_19 = arith.constant 0.000000e+00 : f32
      %18 = vector.broadcast %cst_19 : f32 to vector<128x128xf32>
      %19 = arith.maximumf %17, %18 : vector<128x128xf32>
      %20 = arith.truncf %19 : vector<128x128xf32> to vector<128x128xbf16>
      %cst_20 = arith.constant dense<0.000000e+00> : vector<128x128xf32>
      %21 = tpu.matmul %20, %13, %cst_20 {dimension_numbers = #tpu.dot_dimension_numbers<[1], [0], [0], [1], [0, 0, 1, 1], [], []>} : vector<128x128xbf16>, vector<128x128xbf16>, vector<128x128xf32> -> vector<128x128xf32>
      %22 = vector.broadcast %14 : vector<1x128xf32> to vector<128x128xf32>
      %23 = arith.addf %21, %22 : vector<128x128xf32>
      %cst_21 = arith.constant dense<0xFF800000> : vector<128xf32>
      %24 = vector.multi_reduction <maximumf>, %23, %cst_21 [1] : vector<128x128xf32> to vector<128xf32>
      %25 = vector.shape_cast %24 : vector<128xf32> to vector<128x1xf32>
      %26 = vector.broadcast %25 : vector<128x1xf32> to vector<128x128xf32>
      %27 = arith.subf %23, %26 : vector<128x128xf32>
      %28 = math.exp %27 : vector<128x128xf32>
      %cst_22 = arith.constant dense<0.000000e+00> : vector<128xf32>
      %29 = vector.multi_reduction <add>, %28, %cst_22 [1] : vector<128x128xf32> to vector<128xf32>
      %30 = vector.shape_cast %29 : vector<128xf32> to vector<128x1xf32>
      %31 = math.log %30 : vector<128x1xf32>
      %32 = vector.broadcast %31 : vector<128x1xf32> to vector<128x128xf32>
      %33 = arith.subf %27, %32 : vector<128x128xf32>
      %cst_23 = arith.constant -16.1180954 : f32
      %cst_24 = arith.constant 0.000000e+00 : f32
      %34 = vector.broadcast %cst_23 : f32 to vector<128x128xf32>
      %35 = arith.maximumf %34, %33 : vector<128x128xf32>
      %36 = vector.broadcast %cst_24 : f32 to vector<128x128xf32>
      %37 = arith.minimumf %36, %35 : vector<128x128xf32>
      %cst_25 = arith.constant 1.000000e+00 : f32
      %38 = vector.broadcast %cst_25 : f32 to vector<128x1xf32>
      %39 = arith.divf %38, %30 : vector<128x1xf32>
      %40 = vector.broadcast %39 : vector<128x1xf32> to vector<128x128xf32>
      %41 = arith.mulf %28, %40 : vector<128x128xf32>
      %cst_26 = arith.constant 1.000000e-07 : f32
      %cst_27 = arith.constant 1.000000e+00 : f32
      %42 = vector.broadcast %cst_26 : f32 to vector<128x128xf32>
      %43 = arith.maximumf %42, %41 : vector<128x128xf32>
      %44 = vector.broadcast %cst_27 : f32 to vector<128x128xf32>
      %45 = arith.minimumf %44, %43 : vector<128x128xf32>
      %c0_28 = arith.constant 0 : index
      %c0_29 = arith.constant 0 : index
      %46 = vector.load %arg9[%c0_28, %c0_29] : memref<128x128xf32, #tpu.memory_space<vmem>>, vector<128x128xf32>
      tpu.vector_store %arg9[%c0_28, %c0_29], %45 {strides = array<i32>} : memref<128x128xf32, #tpu.memory_space<vmem>>, vector<128x128xf32>,
      %47 = arith.mulf %45, %37 : vector<128x128xf32>
      %cst_30 = arith.constant dense<0.000000e+00> : vector<128xf32>
      %48 = vector.multi_reduction <add>, %47, %cst_30 [1] : vector<128x128xf32> to vector<128xf32>
      %49 = vector.shape_cast %48 : vector<128xf32> to vector<128x1xf32>
      %c0_31 = arith.constant 0 : index
      %c0_32 = arith.constant 0 : index
      %50 = vector.load %arg10[%c0_31, %c0_32] : memref<128x1xf32, #tpu.memory_space<vmem>>, vector<128x1xf32>
      tpu.vector_store %arg10[%c0_31, %c0_32], %49 {strides = array<i32>} : memref<128x1xf32, #tpu.memory_space<vmem>>, vector<128x1xf32>,
    } else {
    }
    %c0 = arith.constant 0 : index
    %c0_1 = arith.constant 0 : index
    %3 = vector.load %arg9[%c0, %c0_1] : memref<128x128xf32, #tpu.memory_space<vmem>>, vector<128x128xf32>
    %c0_2 = arith.constant 0 : index
    %c0_3 = arith.constant 0 : index
    %4 = vector.load %arg7[%c0_2, %c0_3] : memref<128x128xf32, #tpu.memory_space<vmem>>, vector<128x128xf32>
    %cst = arith.constant dense<0.000000e+00> : vector<128x128xf32>
    %5 = tpu.matmul %3, %4, %cst {dimension_numbers = #tpu.dot_dimension_numbers<[1], [1], [0], [0], [0, 0, 1, 0], [], []>} : vector<128x128xf32>, vector<128x128xf32>, vector<128x128xf32> -> vector<128x128xf32>
    %c0_4 = arith.constant 0 : index
    %c0_5 = arith.constant 0 : index
    %6 = vector.load %arg10[%c0_4, %c0_5] : memref<128x1xf32, #tpu.memory_space<vmem>>, vector<128x1xf32>
    %7 = vector.broadcast %6 : vector<128x1xf32> to vector<128x128xf32>
    %8 = arith.subf %5, %7 : vector<128x128xf32>
    %c0_6 = arith.constant 0 : index
    %c0_7 = arith.constant 0 : index
    %9 = vector.load %arg8[%c0_6, %c0_7] : memref<128x128xf32, #tpu.memory_space<vmem>>, vector<128x128xf32>
    tpu.vector_store %arg8[%c0_6, %c0_7], %8 {strides = array<i32>} : memref<128x128xf32, #tpu.memory_space<vmem>>, vector<128x128xf32>,
    return
  }
  func.func @transform_0(%arg0: i32, %arg1: i32) -> (i32, i32) {
    %c0_i32 = arith.constant 0 : i32
    %c0_i32_0 = arith.constant 0 : i32
    return %arg0, %c0_i32 : i32, i32
  }
  func.func @transform_1(%arg0: i32, %arg1: i32) -> (i32, i32) {
    %c0_i32 = arith.constant 0 : i32
    %c0_i32_0 = arith.constant 0 : i32
    %c0_i32_1 = arith.constant 0 : i32
    return %c0_i32, %c0_i32_0 : i32, i32
  }
  func.func @transform_2(%arg0: i32, %arg1: i32) -> (i32, i32) {
    %c0_i32 = arith.constant 0 : i32
    %c0_i32_0 = arith.constant 0 : i32
    %c0_i32_1 = arith.constant 0 : i32
    return %c0_i32, %c0_i32_0 : i32, i32
  }
  func.func @transform_3(%arg0: i32, %arg1: i32) -> (i32, i32) {
    %c0_i32 = arith.constant 0 : i32
    %c0_i32_0 = arith.constant 0 : i32
    %c0_i32_1 = arith.constant 0 : i32
    return %c0_i32, %c0_i32_0 : i32, i32
  }
  func.func @transform_4(%arg0: i32, %arg1: i32) -> (i32, i32) {
    %c0_i32 = arith.constant 0 : i32
    %c0_i32_0 = arith.constant 0 : i32
    %c0_i32_1 = arith.constant 0 : i32
    return %c0_i32, %c0_i32_0 : i32, i32
  }
  func.func @transform_5(%arg0: i32, %arg1: i32) -> (i32, i32) {
    %c0_i32 = arith.constant 0 : i32
    %c0_i32_0 = arith.constant 0 : i32
    return %arg1, %c0_i32 : i32, i32
  }
  func.func @transform_6(%arg0: i32, %arg1: i32) -> (i32, i32) {
    %c0_i32 = arith.constant 0 : i32
    return %arg0, %arg1 : i32, i32
  }
}

</mosaic_0001>

<llo_original>
// kernel: pseudo_attention.2
$region0: #{pseudo_attention.2}
  #allocation0 [shape = 'u32[]', space=smem, size = 0x4, offset = 0x4, fixed_abs, tag = 'smem constant byte address 0x4 - core index']
  #allocation1 [shape = 'u32[72,128]{1,0:T(1,128)}', space=vmem, size = 0x9000, scoped, tag = 'internal scratch']
  %s0 = inlined_call_operand.vmem [shape: bf16[128,128], index: 0, kind: input, shape index: {}]
  %s1 = inlined_call_operand.vmem [shape: bf16[128,128], index: 1, kind: input, shape index: {}]
  %s2 = inlined_call_operand.vmem [shape: f32[1,128], index: 2, kind: input, shape index: {}]
  %s3 = inlined_call_operand.vmem [shape: bf16[128,128], index: 3, kind: input, shape index: {}]
  %s4 = inlined_call_operand.vmem [shape: f32[1,128], index: 4, kind: input, shape index: {}]
  %s5 = inlined_call_operand.vmem [shape: f32[128,128], index: 5, kind: output, shape index: {}]
  %s6 = sld [smem:[#allocation0]]
  $region30: #{pseudo_attention.2} parent=0
    _
  %s8 = ssub.s32 1, %s6
  %s9 = scalar_select 0, %s8, %s6
  // Predicated region
  $region2: #{pseudo_attention.2} parent=0 // pred_check
    _
  $region3: #{pseudo_attention.2} parent=0 // pred_check_branch
    %11 = sbr.rel (0) target = $region5
  $region4: #{pseudo_attention.2} parent=0 // pred_region
    _
  $region5: #{pseudo_attention.2} parent=0 // pred_fallthru
    _
  // Predicated region
  $region6: #{pseudo_attention.2} parent=0 // pred_check
    _
  $region7: #{pseudo_attention.2} parent=0 // pred_check_branch
    %13 = sbr.rel (0) target = $region9
  $region8: #{pseudo_attention.2} parent=0 // pred_region
    _
  $region9: #{pseudo_attention.2} parent=0 // pred_fallthru
    _
  // Predicated region
  $region10: #{pseudo_attention.2} parent=0 // pred_check
    _
  $region11: #{pseudo_attention.2} parent=0 // pred_check_branch
    %15 = sbr.rel (0) target = $region13
  $region12: #{pseudo_attention.2} parent=0 // pred_region
    _
  $region13: #{pseudo_attention.2} parent=0 // pred_fallthru
    _
  // Predicated region
  $region14: #{pseudo_attention.2} parent=0 // pred_check
    _
  $region15: #{pseudo_attention.2} parent=0 // pred_check_branch
    %17 = sbr.rel (0) target = $region17
  $region16: #{pseudo_attention.2} parent=0 // pred_region
    _
  $region17: #{pseudo_attention.2} parent=0 // pred_fallthru
    _
  // Predicated region
  $region18: #{pseudo_attention.2} parent=0 // pred_check
    _
  $region19: #{pseudo_attention.2} parent=0 // pred_check_branch
    %19 = sbr.rel (0) target = $region21
  $region20: #{pseudo_attention.2} parent=0 // pred_region
    _
  $region21: #{pseudo_attention.2} parent=0 // pred_fallthru
    _
  %v20 = vld [vmem:[%s0] sm:$0xf]
  %v21 = vld [vmem:[%s0 + $0x4] sm:$0xf]
  %v22 = vld [vmem:[%s0 + $0x8] sm:$0xf]
  %v23 = vld [vmem:[%s0 + $0xc] sm:$0xf]
  %v24 = vld [vmem:[%s0 + $0x10] sm:$0xf]
  %v25 = vld [vmem:[%s0 + $0x14] sm:$0xf]
  %v26 = vld [vmem:[%s0 + $0x18] sm:$0xf]
  %v27 = vld [vmem:[%s0 + $0x1c] sm:$0xf]
  %v28 = vld [vmem:[%s0 + $0x20] sm:$0xf]
  %v29 = vld [vmem:[%s0 + $0x24] sm:$0xf]
  %v30 = vld [vmem:[%s0 + $0x28] sm:$0xf]
  %v31 = vld [vmem:[%s0 + $0x2c] sm:$0xf]
  %v32 = vld [vmem:[%s0 + $0x30] sm:$0xf]
  %v33 = vld [vmem:[%s0 + $0x34] sm:$0xf]
  %v34 = vld [vmem:[%s0 + $0x38] sm:$0xf]
  %v35 = vld [vmem:[%s0 + $0x3c] sm:$0xf]
  %v36 = vld [vmem:[%s1] sm:$0xf]
  %v37 = vld [vmem:[%s1 + $0x4] sm:$0xf]
  %v38 = vld [vmem:[%s1 + $0x8] sm:$0xf]
  %v39 = vld [vmem:[%s1 + $0xc] sm:$0xf]
  %v40 = vld [vmem:[%s1 + $0x10] sm:$0xf]
  %v41 = vld [vmem:[%s1 + $0x14] sm:$0xf]
  %v42 = vld [vmem:[%s1 + $0x18] sm:$0xf]
  %v43 = vld [vmem:[%s1 + $0x1c] sm:$0xf]
  %v44 = vld [vmem:[%s1 + $0x20] sm:$0xf]
  %v45 = vld [vmem:[%s1 + $0x24] sm:$0xf]
  %v46 = vld [vmem:[%s1 + $0x28] sm:$0xf]
  %v47 = vld [vmem:[%s1 + $0x2c] sm:$0xf]
  %v48 = vld [vmem:[%s1 + $0x30] sm:$0xf]
  %v49 = vld [vmem:[%s1 + $0x34] sm:$0xf]
  %v50 = vld [vmem:[%s1 + $0x38] sm:$0xf]
  %v51 = vld [vmem:[%s1 + $0x3c] sm:$0xf]
  %v52 = vld [vmem:[%s2] sm:$0x1]
  %v53 = vld [vmem:[%s3] sm:$0xf]
  %v54 = vld [vmem:[%s3 + $0x4] sm:$0xf]
  %v55 = vld [vmem:[%s3 + $0x8] sm:$0xf]
  %v56 = vld [vmem:[%s3 + $0xc] sm:$0xf]
  %v57 = vld [vmem:[%s3 + $0x10] sm:$0xf]
  %v58 = vld [vmem:[%s3 + $0x14] sm:$0xf]
  %v59 = vld [vmem:[%s3 + $0x18] sm:$0xf]
  %v60 = vld [vmem:[%s3 + $0x1c] sm:$0xf]
  %v61 = vld [vmem:[%s3 + $0x20] sm:$0xf]
  %v62 = vld [vmem:[%s3 + $0x24] sm:$0xf]
  %v63 = vld [vmem:[%s3 + $0x28] sm:$0xf]
  %v64 = vld [vmem:[%s3 + $0x2c] sm:$0xf]
  %v65 = vld [vmem:[%s3 + $0x30] sm:$0xf]
  %v66 = vld [vmem:[%s3 + $0x34] sm:$0xf]
  %v67 = vld [vmem:[%s3 + $0x38] sm:$0xf]
  %v68 = vld [vmem:[%s3 + $0x3c] sm:$0xf]
  %v69 = vld [vmem:[%s4] sm:$0x1]
  %v71 = vperm.slane %v52, 0
  %v89 = vunpack.c.l.b16 %v20
  %v90 = vunpack.c.l.b16 %v21
  %v91 = vunpack.c.l.b16 %v22
  %v92 = vunpack.c.l.b16 %v23
  %v93 = vunpack.c.l.b16 %v24
  %v94 = vunpack.c.l.b16 %v25
  %v95 = vunpack.c.l.b16 %v26
  %v96 = vunpack.c.l.b16 %v27
  %v97 = vunpack.c.l.b16 %v28
  %v98 = vunpack.c.l.b16 %v29
  %v99 = vunpack.c.l.b16 %v30
  %v100 = vunpack.c.l.b16 %v31
  %v101 = vunpack.c.l.b16 %v32
  %v102 = vunpack.c.l.b16 %v33
  %v103 = vunpack.c.l.b16 %v34
  %v104 = vunpack.c.l.b16 %v35
  %v105 = vpack.c.b16 %v90, %v89
  %v106 = vpack.c.b16 %v92, %v91
  %v107 = vpack.c.b16 %v94, %v93
  %v108 = vpack.c.b16 %v96, %v95
  %v109 = vpack.c.b16 %v98, %v97
  %v110 = vpack.c.b16 %v100, %v99
  %v111 = vpack.c.b16 %v102, %v101
  %v112 = vpack.c.b16 %v104, %v103
  %v137 = vunpack.c.l.b16 %v36
  %v138 = vunpack.c.l.b16 %v37
  %v139 = vunpack.c.l.b16 %v38
  %v140 = vunpack.c.l.b16 %v39
  %v141 = vunpack.c.l.b16 %v40
  %v142 = vunpack.c.l.b16 %v41
  %v143 = vunpack.c.l.b16 %v42
  %v144 = vunpack.c.l.b16 %v43
  %v145 = vunpack.c.l.b16 %v44
  %v146 = vunpack.c.l.b16 %v45
  %v147 = vunpack.c.l.b16 %v46
  %v148 = vunpack.c.l.b16 %v47
  %v149 = vunpack.c.l.b16 %v48
  %v150 = vunpack.c.l.b16 %v49
  %v151 = vunpack.c.l.b16 %v50
  %v152 = vunpack.c.l.b16 %v51
  %v153 = vpack.c.b16 %v138, %v137
  %v154 = vpack.c.b16 %v140, %v139
  %v155 = vpack.c.b16 %v142, %v141
  %v156 = vpack.c.b16 %v144, %v143
  %v157 = vpack.c.b16 %v146, %v145
  %v158 = vpack.c.b16 %v148, %v147
  %v159 = vpack.c.b16 %v150, %v149
  %v160 = vpack.c.b16 %v152, %v151
  %169 = vmatpush.bf16.msra.mxu0 %v160
  %170 = vmatpush.bf16.msra.mxu0 %v159
  %171 = vmatpush.bf16.msra.mxu0 %v158
  %172 = vmatpush.bf16.msra.mxu0 %v157
  %173 = vmatpush.bf16.msra.mxu0 %v156
  %174 = vmatpush.bf16.msra.mxu0 %v155
  %175 = vmatpush.bf16.msra.mxu0 %v154
  %176 = vmatpush.bf16.msra.mxu0 %v153
  %177 = vmatmul.bf16.gmra.mxu0 %v105
  %v178 = vpop.f32.mrf.mxu0
  %v179 = vadd.f32 %v71, %v178
  %v180 = vpop.f32.mrf.mxu0
  %v181 = vadd.f32 %v71, %v180
  %182 = vmatmul.bf16.gmra.mxu0 %v106
  %v183 = vpop.f32.mrf.mxu0
  %v184 = vadd.f32 %v71, %v183
  %v185 = vpop.f32.mrf.mxu0
  %v186 = vadd.f32 %v71, %v185
  %187 = vmatmul.bf16.gmra.mxu0 %v107
  %v188 = vpop.f32.mrf.mxu0
  %v189 = vadd.f32 %v71, %v188
  %v190 = vpop.f32.mrf.mxu0
  %v191 = vadd.f32 %v71, %v190
  %192 = vmatmul.bf16.gmra.mxu0 %v108
  %v193 = vpop.f32.mrf.mxu0
  %v194 = vadd.f32 %v71, %v193
  %v195 = vpop.f32.mrf.mxu0
  %v196 = vadd.f32 %v71, %v195
  %197 = vmatmul.bf16.gmra.mxu0 %v109
  %v198 = vpop.f32.mrf.mxu0
  %v199 = vadd.f32 %v71, %v198
  %v200 = vpop.f32.mrf.mxu0
  %v201 = vadd.f32 %v71, %v200
  %202 = vmatmul.bf16.gmra.mxu0 %v110
  %v203 = vpop.f32.mrf.mxu0
  %v204 = vadd.f32 %v71, %v203
  %v205 = vpop.f32.mrf.mxu0
  %v206 = vadd.f32 %v71, %v205
  %207 = vmatmul.bf16.gmra.mxu0 %v111
  %v208 = vpop.f32.mrf.mxu0
  %v209 = vadd.f32 %v71, %v208
  %v210 = vpop.f32.mrf.mxu0
  %v211 = vadd.f32 %v71, %v210
  %212 = vmatmul.bf16.gmra.mxu0 %v112
  %v213 = vpop.f32.mrf.mxu0
  %v214 = vadd.f32 %v71, %v213
  %v215 = vpop.f32.mrf.mxu0
  %v216 = vadd.f32 %v71, %v215
  %217 = vdwg.mxu0
  %v218 = vmax.f32 %v179, 0.0
  %v219 = vmax.f32 %v181, 0.0
  %v220 = vmax.f32 %v184, 0.0
  %v221 = vmax.f32 %v186, 0.0
  %v222 = vmax.f32 %v189, 0.0
  %v223 = vmax.f32 %v191, 0.0
  %v224 = vmax.f32 %v194, 0.0
  %v225 = vmax.f32 %v196, 0.0
  %v226 = vmax.f32 %v199, 0.0
  %v227 = vmax.f32 %v201, 0.0
  %v228 = vmax.f32 %v204, 0.0
  %v229 = vmax.f32 %v206, 0.0
  %v230 = vmax.f32 %v209, 0.0
  %v231 = vmax.f32 %v211, 0.0
  %v232 = vmax.f32 %v214, 0.0
  %v233 = vmax.f32 %v216, 0.0
  %v234 = vpack.c.bf16 %v219, %v218
  %v235 = vpack.c.bf16 %v221, %v220
  %v236 = vpack.c.bf16 %v223, %v222
  %v237 = vpack.c.bf16 %v225, %v224
  %v238 = vpack.c.bf16 %v227, %v226
  %v239 = vpack.c.bf16 %v229, %v228
  %v240 = vpack.c.bf16 %v231, %v230
  %v241 = vpack.c.bf16 %v233, %v232
  %v243 = vperm.slane %v69, 0
  %v261 = vunpack.c.l.b16 %v53
  %v262 = vunpack.c.l.b16 %v54
  %v263 = vunpack.c.l.b16 %v55
  %v264 = vunpack.c.l.b16 %v56
  %v265 = vunpack.c.l.b16 %v57
  %v266 = vunpack.c.l.b16 %v58
  %v267 = vunpack.c.l.b16 %v59
  %v268 = vunpack.c.l.b16 %v60
  %v269 = vunpack.c.l.b16 %v61
  %v270 = vunpack.c.l.b16 %v62
  %v271 = vunpack.c.l.b16 %v63
  %v272 = vunpack.c.l.b16 %v64
  %v273 = vunpack.c.l.b16 %v65
  %v274 = vunpack.c.l.b16 %v66
  %v275 = vunpack.c.l.b16 %v67
  %v276 = vunpack.c.l.b16 %v68
  %v277 = vpack.c.b16 %v262, %v261
  %v278 = vpack.c.b16 %v264, %v263
  %v279 = vpack.c.b16 %v266, %v265
  %v280 = vpack.c.b16 %v268, %v267
  %v281 = vpack.c.b16 %v270, %v269
  %v282 = vpack.c.b16 %v272, %v271
  %v283 = vpack.c.b16 %v274, %v273
  %v284 = vpack.c.b16 %v276, %v275
  %293 = vmatpush.bf16.msra.mxu0 %v284
  %294 = vmatpush.bf16.msra.mxu0 %v283
  %295 = vmatpush.bf16.msra.mxu0 %v282
  %296 = vmatpush.bf16.msra.mxu0 %v281
  %297 = vmatpush.bf16.msra.mxu0 %v280
  %298 = vmatpush.bf16.msra.mxu0 %v279
  %299 = vmatpush.bf16.msra.mxu0 %v278
  %300 = vmatpush.bf16.msra.mxu0 %v277
  %301 = vmatmul.bf16.gmra.mxu0 %v234
  %v302 = vpop.f32.mrf.mxu0
  %v303 = vadd.f32 %v243, %v302
  %v304 = vpop.f32.mrf.mxu0
  %v305 = vadd.f32 %v243, %v304
  %306 = vmatmul.bf16.gmra.mxu0 %v235
  %v307 = vpop.f32.mrf.mxu0
  %v308 = vadd.f32 %v243, %v307
  %v309 = vpop.f32.mrf.mxu0
  %v310 = vadd.f32 %v243, %v309
  %311 = vmatmul.bf16.gmra.mxu0 %v236
  %v312 = vpop.f32.mrf.mxu0
  %v313 = vadd.f32 %v243, %v312
  %v314 = vpop.f32.mrf.mxu0
  %v315 = vadd.f32 %v243, %v314
  %316 = vmatmul.bf16.gmra.mxu0 %v237
  %v317 = vpop.f32.mrf.mxu0
  %v318 = vadd.f32 %v243, %v317
  %v319 = vpop.f32.mrf.mxu0
  %v320 = vadd.f32 %v243, %v319
  %321 = vmatmul.bf16.gmra.mxu0 %v238
  %v322 = vpop.f32.mrf.mxu0
  %v323 = vadd.f32 %v243, %v322
  %v324 = vpop.f32.mrf.mxu0
  %v325 = vadd.f32 %v243, %v324
  %326 = vmatmul.bf16.gmra.mxu0 %v239
  %v327 = vpop.f32.mrf.mxu0
  %v328 = vadd.f32 %v243, %v327
  %v329 = vpop.f32.mrf.mxu0
  %v330 = vadd.f32 %v243, %v329
  %331 = vmatmul.bf16.gmra.mxu0 %v240
  %v332 = vpop.f32.mrf.mxu0
  %v333 = vadd.f32 %v243, %v332
  %v334 = vpop.f32.mrf.mxu0
  %v335 = vadd.f32 %v243, %v334
  %336 = vmatmul.bf16.gmra.mxu0 %v241
  %v337 = vpop.f32.mrf.mxu0
  %v338 = vadd.f32 %v243, %v337
  %v339 = vpop.f32.mrf.mxu0
  %v340 = vadd.f32 %v243, %v339
  %341 = vdwg.mxu0
  %342 = vmax.xlane.f32.xlu0 %v303
  %v343 = vpop.xlane.xlu0 %342
  %344 = vmax.xlane.f32.xlu0 %v305
  %v345 = vpop.xlane.xlu0 %344
  %346 = vmax.xlane.f32.xlu0 %v308
  %v347 = vpop.xlane.xlu0 %346
  %348 = vmax.xlane.f32.xlu0 %v310
  %v349 = vpop.xlane.xlu0 %348
  %350 = vmax.xlane.f32.xlu0 %v313
  %v351 = vpop.xlane.xlu0 %350
  %352 = vmax.xlane.f32.xlu0 %v315
  %v353 = vpop.xlane.xlu0 %352
  %354 = vmax.xlane.f32.xlu0 %v318
  %v355 = vpop.xlane.xlu0 %354
  %356 = vmax.xlane.f32.xlu0 %v320
  %v357 = vpop.xlane.xlu0 %356
  %358 = vmax.xlane.f32.xlu0 %v323
  %v359 = vpop.xlane.xlu0 %358
  %360 = vmax.xlane.f32.xlu0 %v325
  %v361 = vpop.xlane.xlu0 %360
  %362 = vmax.xlane.f32.xlu0 %v328
  %v363 = vpop.xlane.xlu0 %362
  %364 = vmax.xlane.f32.xlu0 %v330
  %v365 = vpop.xlane.xlu0 %364
  %366 = vmax.xlane.f32.xlu0 %v333
  %v367 = vpop.xlane.xlu0 %366
  %368 = vmax.xlane.f32.xlu0 %v335
  %v369 = vpop.xlane.xlu0 %368
  %370 = vmax.xlane.f32.xlu0 %v338
  %v371 = vpop.xlane.xlu0 %370
  %372 = vmax.xlane.f32.xlu0 %v340
  %v373 = vpop.xlane.xlu0 %372
  %v374 = vsub.f32 %v303, %v343
  %v375 = vsub.f32 %v305, %v345
  %v376 = vsub.f32 %v308, %v347
  %v377 = vsub.f32 %v310, %v349
  %v378 = vsub.f32 %v313, %v351
  %v379 = vsub.f32 %v315, %v353
  %v380 = vsub.f32 %v318, %v355
  %v381 = vsub.f32 %v320, %v357
  %v382 = vsub.f32 %v323, %v359
  %v383 = vsub.f32 %v325, %v361
  %v384 = vsub.f32 %v328, %v363
  %v385 = vsub.f32 %v330, %v365
  %v386 = vsub.f32 %v333, %v367
  %v387 = vsub.f32 %v335, %v369
  %v388 = vsub.f32 %v338, %v371
  %v389 = vsub.f32 %v340, %v373
  %v390 = vmul.f32 %v374, 1.442695
  %v391 = vpow.pop %v390
  %v392 = vmul.f32 %v375, 1.442695
  %v393 = vpow.pop %v392
  %v394 = vmul.f32 %v376, 1.442695
  %v395 = vpow.pop %v394
  %v396 = vmul.f32 %v377, 1.442695
  %v397 = vpow.pop %v396
  %v398 = vmul.f32 %v378, 1.442695
  %v399 = vpow.pop %v398
  %v400 = vmul.f32 %v379, 1.442695
  %v401 = vpow.pop %v400
  %v402 = vmul.f32 %v380, 1.442695
  %v403 = vpow.pop %v402
  %v404 = vmul.f32 %v381, 1.442695
  %v405 = vpow.pop %v404
  %v406 = vmul.f32 %v382, 1.442695
  %v407 = vpow.pop %v406
  %v408 = vmul.f32 %v383, 1.442695
  %v409 = vpow.pop %v408
  %v410 = vmul.f32 %v384, 1.442695
  %v411 = vpow.pop %v410
  %v412 = vmul.f32 %v385, 1.442695
  %v413 = vpow.pop %v412
  %v414 = vmul.f32 %v386, 1.442695
  %v415 = vpow.pop %v414
  %v416 = vmul.f32 %v387, 1.442695
  %v417 = vpow.pop %v416
  %v418 = vmul.f32 %v388, 1.442695
  %v419 = vpow.pop %v418
  %v420 = vmul.f32 %v389, 1.442695
  %v421 = vpow.pop %v420
  %422 = vadd.xlane.f32.xlu0 %v391
  %v423 = vpop.xlane.xlu0 %422
  %424 = vadd.xlane.f32.xlu0 %v393
  %v425 = vpop.xlane.xlu0 %424
  %426 = vadd.xlane.f32.xlu0 %v395
  %v427 = vpop.xlane.xlu0 %426
  %428 = vadd.xlane.f32.xlu0 %v397
  %v429 = vpop.xlane.xlu0 %428
  %430 = vadd.xlane.f32.xlu0 %v399
  %v431 = vpop.xlane.xlu0 %430
  %432 = vadd.xlane.f32.xlu0 %v401
  %v433 = vpop.xlane.xlu0 %432
  %434 = vadd.xlane.f32.xlu0 %v403
  %v435 = vpop.xlane.xlu0 %434
  %436 = vadd.xlane.f32.xlu0 %v405
  %v437 = vpop.xlane.xlu0 %436
  %438 = vadd.xlane.f32.xlu0 %v407
  %v439 = vpop.xlane.xlu0 %438
  %440 = vadd.xlane.f32.xlu0 %v409
  %v441 = vpop.xlane.xlu0 %440
  %442 = vadd.xlane.f32.xlu0 %v411
  %v443 = vpop.xlane.xlu0 %442
  %444 = vadd.xlane.f32.xlu0 %v413
  %v445 = vpop.xlane.xlu0 %444
  %446 = vadd.xlane.f32.xlu0 %v415
  %v447 = vpop.xlane.xlu0 %446
  %448 = vadd.xlane.f32.xlu0 %v417
  %v449 = vpop.xlane.xlu0 %448
  %450 = vadd.xlane.f32.xlu0 %v419
  %v451 = vpop.xlane.xlu0 %450
  %452 = vadd.xlane.f32.xlu0 %v421
  %v453 = vpop.xlane.xlu0 %452
  %v454 = vlog2.pop %v423
  %v455 = vmul.f32 %v454, 0.6931472
  %v456 = vlog2.pop %v425
  %v457 = vmul.f32 %v456, 0.6931472
  %v458 = vlog2.pop %v427
  %v459 = vmul.f32 %v458, 0.6931472
  %v460 = vlog2.pop %v429
  %v461 = vmul.f32 %v460, 0.6931472
  %v462 = vlog2.pop %v431
  %v463 = vmul.f32 %v462, 0.6931472
  %v464 = vlog2.pop %v433
  %v465 = vmul.f32 %v464, 0.6931472
  %v466 = vlog2.pop %v435
  %v467 = vmul.f32 %v466, 0.6931472
  %v468 = vlog2.pop %v437
  %v469 = vmul.f32 %v468, 0.6931472
  %v470 = vlog2.pop %v439
  %v471 = vmul.f32 %v470, 0.6931472
  %v472 = vlog2.pop %v441
  %v473 = vmul.f32 %v472, 0.6931472
  %v474 = vlog2.pop %v443
  %v475 = vmul.f32 %v474, 0.6931472
  %v476 = vlog2.pop %v445
  %v477 = vmul.f32 %v476, 0.6931472
  %v478 = vlog2.pop %v447
  %v479 = vmul.f32 %v478, 0.6931472
  %v480 = vlog2.pop %v449
  %v481 = vmul.f32 %v480, 0.6931472
  %v482 = vlog2.pop %v451
  %v483 = vmul.f32 %v482, 0.6931472
  %v484 = vlog2.pop %v453
  %v485 = vmul.f32 %v484, 0.6931472
  %v486 = vsub.f32 %v374, %v455
  %v487 = vsub.f32 %v375, %v457
  %v488 = vsub.f32 %v376, %v459
  %v489 = vsub.f32 %v377, %v461
  %v490 = vsub.f32 %v378, %v463
  %v491 = vsub.f32 %v379, %v465
  %v492 = vsub.f32 %v380, %v467
  %v493 = vsub.f32 %v381, %v469
  %v494 = vsub.f32 %v382, %v471
  %v495 = vsub.f32 %v383, %v473
  %v496 = vsub.f32 %v384, %v475
  %v497 = vsub.f32 %v385, %v477
  %v498 = vsub.f32 %v386, %v479
  %v499 = vsub.f32 %v387, %v481
  %v500 = vsub.f32 %v388, %v483
  %v501 = vsub.f32 %v389, %v485
  %v502 = vmax.f32 %v486, -16.118095
  %v503 = vmax.f32 %v487, -16.118095
  %v504 = vmax.f32 %v488, -16.118095
  %v505 = vmax.f32 %v489, -16.118095
  %v506 = vmax.f32 %v490, -16.118095
  %v507 = vmax.f32 %v491, -16.118095
  %v508 = vmax.f32 %v492, -16.118095
  %v509 = vmax.f32 %v493, -16.118095
  %v510 = vmax.f32 %v494, -16.118095
  %v511 = vmax.f32 %v495, -16.118095
  %v512 = vmax.f32 %v496, -16.118095
  %v513 = vmax.f32 %v497, -16.118095
  %v514 = vmax.f32 %v498, -16.118095
  %v515 = vmax.f32 %v499, -16.118095
  %v516 = vmax.f32 %v500, -16.118095
  %v517 = vmax.f32 %v501, -16.118095
  %v518 = vmin.f32 %v502, 0.0
  %v519 = vmin.f32 %v503, 0.0
  %v520 = vmin.f32 %v504, 0.0
  %v521 = vmin.f32 %v505, 0.0
  %v522 = vmin.f32 %v506, 0.0
  %v523 = vmin.f32 %v507, 0.0
  %v524 = vmin.f32 %v508, 0.0
  %v525 = vmin.f32 %v509, 0.0
  %v526 = vmin.f32 %v510, 0.0
  %v527 = vmin.f32 %v511, 0.0
  %v528 = vmin.f32 %v512, 0.0
  %v529 = vmin.f32 %v513, 0.0
  %v530 = vmin.f32 %v514, 0.0
  %v531 = vmin.f32 %v515, 0.0
  %v532 = vmin.f32 %v516, 0.0
  %v533 = vmin.f32 %v517, 0.0
  %534 = vst [vmem:[%s5] sm:$0xff] %v518
  %535 = vst [vmem:[%s5 + $0x8] sm:$0xff] %v519
  %536 = vst [vmem:[%s5 + $0x10] sm:$0xff] %v520
  %537 = vst [vmem:[%s5 + $0x18] sm:$0xff] %v521
  %538 = vst [vmem:[%s5 + $0x20] sm:$0xff] %v522
  %539 = vst [vmem:[%s5 + $0x28] sm:$0xff] %v523
  %540 = vst [vmem:[%s5 + $0x30] sm:$0xff] %v524
  %541 = vst [vmem:[%s5 + $0x38] sm:$0xff] %v525
  %542 = vst [vmem:[%s5 + $0x40] sm:$0xff] %v526
  %543 = vst [vmem:[%s5 + $0x48] sm:$0xff] %v527
  %544 = vst [vmem:[%s5 + $0x50] sm:$0xff] %v528
  %545 = vst [vmem:[%s5 + $0x58] sm:$0xff] %v529
  %546 = vst [vmem:[%s5 + $0x60] sm:$0xff] %v530
  %547 = vst [vmem:[%s5 + $0x68] sm:$0xff] %v531
  %548 = vst [vmem:[%s5 + $0x70] sm:$0xff] %v532
  %549 = vst [vmem:[%s5 + $0x78] sm:$0xff] %v533
  // Predicated region
  $region22: #{pseudo_attention.2} parent=0 // pred_check
    _
  $region23: #{pseudo_attention.2} parent=0 // pred_check_branch
    %551 = sbr.rel (0) target = $region25
  $region24: #{pseudo_attention.2} parent=0 // pred_region
    _
  $region25: #{pseudo_attention.2} parent=0 // pred_fallthru
    _
  // Predicated region
  $region26: #{pseudo_attention.2} parent=0 // pred_check
    _
  $region27: #{pseudo_attention.2} parent=0 // pred_check_branch
    %553 = sbr.rel (0) target = $region29
  $region28: #{pseudo_attention.2} parent=0 // pred_region
    _
  $region29: #{pseudo_attention.2} parent=0 // pred_fallthru
    _

// kernel: pseudo_attention.3
$region0: #{pseudo_attention.3}
  #allocation0 [shape = 'u32[]', space=smem, size = 0x4, offset = 0x4, fixed_abs, tag = 'smem constant byte address 0x4 - core index']
  #allocation1 [shape = 'u32[72,128]{1,0:T(1,128)}', space=vmem, size = 0x9000, scoped, tag = 'internal scratch']
  #allocation2 [shape = 'f32[128,128]{1,0:T(8,128)}', space=vmem, size = 0x10000, scoped, tag = 'scratch operand']
  #allocation3 [shape = 'f32[128,1]{1,0:T(8,128)}', space=vmem, size = 0x10000, scoped, tag = 'scratch operand']
  %s0 = inlined_call_operand.vmem [shape: bf16[128,128], index: 0, kind: input, shape index: {}]
  %s1 = inlined_call_operand.vmem [shape: bf16[128,128], index: 1, kind: input, shape index: {}]
  %s2 = inlined_call_operand.vmem [shape: f32[1,128], index: 2, kind: input, shape index: {}]
  %s3 = inlined_call_operand.vmem [shape: bf16[128,128], index: 3, kind: input, shape index: {}]
  %s4 = inlined_call_operand.vmem [shape: f32[1,128], index: 4, kind: input, shape index: {}]
  %s5 = inlined_call_operand.vmem [shape: f32[128,128], index: 5, kind: input, shape index: {}]
  %s6 = inlined_call_operand.vmem [shape: f32[128,128], index: 6, kind: output, shape index: {}]
  %s7 = sld [smem:[#allocation0]]
  $region38: #{pseudo_attention.3} parent=0
    _
  %s9 = ssub.s32 1, %s7
  %s10 = scalar_select 0, %s9, %s7
  // Predicated region
  $region2: #{pseudo_attention.3} parent=0 // pred_check
    _
  $region3: #{pseudo_attention.3} parent=0 // pred_check_branch
    %12 = sbr.rel (0) target = $region5
  $region4: #{pseudo_attention.3} parent=0 // pred_region
    _
  $region5: #{pseudo_attention.3} parent=0 // pred_fallthru
    _
  // Predicated region
  $region6: #{pseudo_attention.3} parent=0 // pred_check
    _
  $region7: #{pseudo_attention.3} parent=0 // pred_check_branch
    %14 = sbr.rel (0) target = $region9
  $region8: #{pseudo_attention.3} parent=0 // pred_region
    _
  $region9: #{pseudo_attention.3} parent=0 // pred_fallthru
    _
  // Predicated region
  $region10: #{pseudo_attention.3} parent=0 // pred_check
    _
  $region11: #{pseudo_attention.3} parent=0 // pred_check_branch
    %16 = sbr.rel (0) target = $region13
  $region12: #{pseudo_attention.3} parent=0 // pred_region
    _
  $region13: #{pseudo_attention.3} parent=0 // pred_fallthru
    _
  // Predicated region
  $region14: #{pseudo_attention.3} parent=0 // pred_check
    _
  $region15: #{pseudo_attention.3} parent=0 // pred_check_branch
    %18 = sbr.rel (0) target = $region17
  $region16: #{pseudo_attention.3} parent=0 // pred_region
    _
  $region17: #{pseudo_attention.3} parent=0 // pred_fallthru
    _
  // Predicated region
  $region18: #{pseudo_attention.3} parent=0 // pred_check
    _
  $region19: #{pseudo_attention.3} parent=0 // pred_check_branch
    %20 = sbr.rel (0) target = $region21
  $region20: #{pseudo_attention.3} parent=0 // pred_region
    _
  $region21: #{pseudo_attention.3} parent=0 // pred_fallthru
    _
  // Predicated region
  $region22: #{pseudo_attention.3} parent=0 // pred_check
    _
  $region23: #{pseudo_attention.3} parent=0 // pred_check_branch
    %22 = sbr.rel (0) target = $region25
  $region24: #{pseudo_attention.3} parent=0 // pred_region
    _
  $region25: #{pseudo_attention.3} parent=0 // pred_fallthru
    _
  %p23 = scmp.eq.s32.totalorder 0, 0
  // Predicated region
  $region26: #{pseudo_attention.3} parent=0 // pred_check
    %p24 = pneg %p23
  $region27: #{pseudo_attention.3} parent=0 // pred_check_branch
    %26 = sbr.rel (%p24) target = $region29
  $region28: #{pseudo_attention.3} parent=0 // pred_region
    %v27 = vld [vmem:[%s0] sm:$0xf]
    %v28 = vld [vmem:[%s0 + $0x4] sm:$0xf]
    %v29 = vld [vmem:[%s0 + $0x8] sm:$0xf]
    %v30 = vld [vmem:[%s0 + $0xc] sm:$0xf]
    %v31 = vld [vmem:[%s0 + $0x10] sm:$0xf]
    %v32 = vld [vmem:[%s0 + $0x14] sm:$0xf]
    %v33 = vld [vmem:[%s0 + $0x18] sm:$0xf]
    %v34 = vld [vmem:[%s0 + $0x1c] sm:$0xf]
    %v35 = vld [vmem:[%s0 + $0x20] sm:$0xf]
    %v36 = vld [vmem:[%s0 + $0x24] sm:$0xf]
    %v37 = vld [vmem:[%s0 + $0x28] sm:$0xf]
    %v38 = vld [vmem:[%s0 + $0x2c] sm:$0xf]
    %v39 = vld [vmem:[%s0 + $0x30] sm:$0xf]
    %v40 = vld [vmem:[%s0 + $0x34] sm:$0xf]
    %v41 = vld [vmem:[%s0 + $0x38] sm:$0xf]
    %v42 = vld [vmem:[%s0 + $0x3c] sm:$0xf]
    %v43 = vld [vmem:[%s1] sm:$0xf]
    %v44 = vld [vmem:[%s1 + $0x4] sm:$0xf]
    %v45 = vld [vmem:[%s1 + $0x8] sm:$0xf]
    %v46 = vld [vmem:[%s1 + $0xc] sm:$0xf]
    %v47 = vld [vmem:[%s1 + $0x10] sm:$0xf]
    %v48 = vld [vmem:[%s1 + $0x14] sm:$0xf]
    %v49 = vld [vmem:[%s1 + $0x18] sm:$0xf]
    %v50 = vld [vmem:[%s1 + $0x1c] sm:$0xf]
    %v51 = vld [vmem:[%s1 + $0x20] sm:$0xf]
    %v52 = vld [vmem:[%s1 + $0x24] sm:$0xf]
    %v53 = vld [vmem:[%s1 + $0x28] sm:$0xf]
    %v54 = vld [vmem:[%s1 + $0x2c] sm:$0xf]
    %v55 = vld [vmem:[%s1 + $0x30] sm:$0xf]
    %v56 = vld [vmem:[%s1 + $0x34] sm:$0xf]
    %v57 = vld [vmem:[%s1 + $0x38] sm:$0xf]
    %v58 = vld [vmem:[%s1 + $0x3c] sm:$0xf]
    %v59 = vld [vmem:[%s2] sm:$0x1]
    %v60 = vld [vmem:[%s3] sm:$0xf]
    %v61 = vld [vmem:[%s3 + $0x4] sm:$0xf]
    %v62 = vld [vmem:[%s3 + $0x8] sm:$0xf]
    %v63 = vld [vmem:[%s3 + $0xc] sm:$0xf]
    %v64 = vld [vmem:[%s3 + $0x10] sm:$0xf]
    %v65 = vld [vmem:[%s3 + $0x14] sm:$0xf]
    %v66 = vld [vmem:[%s3 + $0x18] sm:$0xf]
    %v67 = vld [vmem:[%s3 + $0x1c] sm:$0xf]
    %v68 = vld [vmem:[%s3 + $0x20] sm:$0xf]
    %v69 = vld [vmem:[%s3 + $0x24] sm:$0xf]
    %v70 = vld [vmem:[%s3 + $0x28] sm:$0xf]
    %v71 = vld [vmem:[%s3 + $0x2c] sm:$0xf]
    %v72 = vld [vmem:[%s3 + $0x30] sm:$0xf]
    %v73 = vld [vmem:[%s3 + $0x34] sm:$0xf]
    %v74 = vld [vmem:[%s3 + $0x38] sm:$0xf]
    %v75 = vld [vmem:[%s3 + $0x3c] sm:$0xf]
    %v76 = vld [vmem:[%s4] sm:$0x1]
    %v78 = vperm.slane %v59, 0
    %v96 = vunpack.c.l.b16 %v27
    %v97 = vunpack.c.l.b16 %v28
    %v98 = vunpack.c.l.b16 %v29
    %v99 = vunpack.c.l.b16 %v30
    %v100 = vunpack.c.l.b16 %v31
    %v101 = vunpack.c.l.b16 %v32
    %v102 = vunpack.c.l.b16 %v33
    %v103 = vunpack.c.l.b16 %v34
    %v104 = vunpack.c.l.b16 %v35
    %v105 = vunpack.c.l.b16 %v36
    %v106 = vunpack.c.l.b16 %v37
    %v107 = vunpack.c.l.b16 %v38
    %v108 = vunpack.c.l.b16 %v39
    %v109 = vunpack.c.l.b16 %v40
    %v110 = vunpack.c.l.b16 %v41
    %v111 = vunpack.c.l.b16 %v42
    %v112 = vpack.c.b16 %v97, %v96
    %v113 = vpack.c.b16 %v99, %v98
    %v114 = vpack.c.b16 %v101, %v100
    %v115 = vpack.c.b16 %v103, %v102
    %v116 = vpack.c.b16 %v105, %v104
    %v117 = vpack.c.b16 %v107, %v106
    %v118 = vpack.c.b16 %v109, %v108
    %v119 = vpack.c.b16 %v111, %v110
    %v144 = vunpack.c.l.b16 %v43
    %v145 = vunpack.c.l.b16 %v44
    %v146 = vunpack.c.l.b16 %v45
    %v147 = vunpack.c.l.b16 %v46
    %v148 = vunpack.c.l.b16 %v47
    %v149 = vunpack.c.l.b16 %v48
    %v150 = vunpack.c.l.b16 %v49
    %v151 = vunpack.c.l.b16 %v50
    %v152 = vunpack.c.l.b16 %v51
    %v153 = vunpack.c.l.b16 %v52
    %v154 = vunpack.c.l.b16 %v53
    %v155 = vunpack.c.l.b16 %v54
    %v156 = vunpack.c.l.b16 %v55
    %v157 = vunpack.c.l.b16 %v56
    %v158 = vunpack.c.l.b16 %v57
    %v159 = vunpack.c.l.b16 %v58
    %v160 = vpack.c.b16 %v145, %v144
    %v161 = vpack.c.b16 %v147, %v146
    %v162 = vpack.c.b16 %v149, %v148
    %v163 = vpack.c.b16 %v151, %v150
    %v164 = vpack.c.b16 %v153, %v152
    %v165 = vpack.c.b16 %v155, %v154
    %v166 = vpack.c.b16 %v157, %v156
    %v167 = vpack.c.b16 %v159, %v158
    %176 = vmatpush.bf16.msra.mxu0 %v167
    %177 = vmatpush.bf16.msra.mxu0 %v166
    %178 = vmatpush.bf16.msra.mxu0 %v165
    %179 = vmatpush.bf16.msra.mxu0 %v164
    %180 = vmatpush.bf16.msra.mxu0 %v163
    %181 = vmatpush.bf16.msra.mxu0 %v162
    %182 = vmatpush.bf16.msra.mxu0 %v161
    %183 = vmatpush.bf16.msra.mxu0 %v160
    %184 = vmatmul.bf16.gmra.mxu0 %v112
    %v185 = vpop.f32.mrf.mxu0
    %v186 = vadd.f32 %v78, %v185
    %v187 = vpop.f32.mrf.mxu0
    %v188 = vadd.f32 %v78, %v187
    %189 = vmatmul.bf16.gmra.mxu0 %v113
    %v190 = vpop.f32.mrf.mxu0
    %v191 = vadd.f32 %v78, %v190
    %v192 = vpop.f32.mrf.mxu0
    %v193 = vadd.f32 %v78, %v192
    %194 = vmatmul.bf16.gmra.mxu0 %v114
    %v195 = vpop.f32.mrf.mxu0
    %v196 = vadd.f32 %v78, %v195
    %v197 = vpop.f32.mrf.mxu0
    %v198 = vadd.f32 %v78, %v197
    %199 = vmatmul.bf16.gmra.mxu0 %v115
    %v200 = vpop.f32.mrf.mxu0
    %v201 = vadd.f32 %v78, %v200
    %v202 = vpop.f32.mrf.mxu0
    %v203 = vadd.f32 %v78, %v202
    %204 = vmatmul.bf16.gmra.mxu0 %v116
    %v205 = vpop.f32.mrf.mxu0
    %v206 = vadd.f32 %v78, %v205
    %v207 = vpop.f32.mrf.mxu0
    %v208 = vadd.f32 %v78, %v207
    %209 = vmatmul.bf16.gmra.mxu0 %v117
    %v210 = vpop.f32.mrf.mxu0
    %v211 = vadd.f32 %v78, %v210
    %v212 = vpop.f32.mrf.mxu0
    %v213 = vadd.f32 %v78, %v212
    %214 = vmatmul.bf16.gmra.mxu0 %v118
    %v215 = vpop.f32.mrf.mxu0
    %v216 = vadd.f32 %v78, %v215
    %v217 = vpop.f32.mrf.mxu0
    %v218 = vadd.f32 %v78, %v217
    %219 = vmatmul.bf16.gmra.mxu0 %v119
    %v220 = vpop.f32.mrf.mxu0
    %v221 = vadd.f32 %v78, %v220
    %v222 = vpop.f32.mrf.mxu0
    %v223 = vadd.f32 %v78, %v222
    %224 = vdwg.mxu0
    %v225 = vmax.f32 %v186, 0.0
    %v226 = vmax.f32 %v188, 0.0
    %v227 = vmax.f32 %v191, 0.0
    %v228 = vmax.f32 %v193, 0.0
    %v229 = vmax.f32 %v196, 0.0
    %v230 = vmax.f32 %v198, 0.0
    %v231 = vmax.f32 %v201, 0.0
    %v232 = vmax.f32 %v203, 0.0
    %v233 = vmax.f32 %v206, 0.0
    %v234 = vmax.f32 %v208, 0.0
    %v235 = vmax.f32 %v211, 0.0
    %v236 = vmax.f32 %v213, 0.0
    %v237 = vmax.f32 %v216, 0.0
    %v238 = vmax.f32 %v218, 0.0
    %v239 = vmax.f32 %v221, 0.0
    %v240 = vmax.f32 %v223, 0.0
    %v241 = vpack.c.bf16 %v226, %v225
    %v242 = vpack.c.bf16 %v228, %v227
    %v243 = vpack.c.bf16 %v230, %v229
    %v244 = vpack.c.bf16 %v232, %v231
    %v245 = vpack.c.bf16 %v234, %v233
    %v246 = vpack.c.bf16 %v236, %v235
    %v247 = vpack.c.bf16 %v238, %v237
    %v248 = vpack.c.bf16 %v240, %v239
    %v250 = vperm.slane %v76, 0
    %v268 = vunpack.c.l.b16 %v60
    %v269 = vunpack.c.l.b16 %v61
    %v270 = vunpack.c.l.b16 %v62
    %v271 = vunpack.c.l.b16 %v63
    %v272 = vunpack.c.l.b16 %v64
    %v273 = vunpack.c.l.b16 %v65
    %v274 = vunpack.c.l.b16 %v66
    %v275 = vunpack.c.l.b16 %v67
    %v276 = vunpack.c.l.b16 %v68
    %v277 = vunpack.c.l.b16 %v69
    %v278 = vunpack.c.l.b16 %v70
    %v279 = vunpack.c.l.b16 %v71
    %v280 = vunpack.c.l.b16 %v72
    %v281 = vunpack.c.l.b16 %v73
    %v282 = vunpack.c.l.b16 %v74
    %v283 = vunpack.c.l.b16 %v75
    %v284 = vpack.c.b16 %v269, %v268
    %v285 = vpack.c.b16 %v271, %v270
    %v286 = vpack.c.b16 %v273, %v272
    %v287 = vpack.c.b16 %v275, %v274
    %v288 = vpack.c.b16 %v277, %v276
    %v289 = vpack.c.b16 %v279, %v278
    %v290 = vpack.c.b16 %v281, %v280
    %v291 = vpack.c.b16 %v283, %v282
    %300 = vmatpush.bf16.msra.mxu0 %v291
    %301 = vmatpush.bf16.msra.mxu0 %v290
    %302 = vmatpush.bf16.msra.mxu0 %v289
    %303 = vmatpush.bf16.msra.mxu0 %v288
    %304 = vmatpush.bf16.msra.mxu0 %v287
    %305 = vmatpush.bf16.msra.mxu0 %v286
    %306 = vmatpush.bf16.msra.mxu0 %v285
    %307 = vmatpush.bf16.msra.mxu0 %v284
    %308 = vmatmul.bf16.gmra.mxu0 %v241
    %v309 = vpop.f32.mrf.mxu0
    %v310 = vadd.f32 %v250, %v309
    %v311 = vpop.f32.mrf.mxu0
    %v312 = vadd.f32 %v250, %v311
    %313 = vmatmul.bf16.gmra.mxu0 %v242
    %v314 = vpop.f32.mrf.mxu0
    %v315 = vadd.f32 %v250, %v314
    %v316 = vpop.f32.mrf.mxu0
    %v317 = vadd.f32 %v250, %v316
    %318 = vmatmul.bf16.gmra.mxu0 %v243
    %v319 = vpop.f32.mrf.mxu0
    %v320 = vadd.f32 %v250, %v319
    %v321 = vpop.f32.mrf.mxu0
    %v322 = vadd.f32 %v250, %v321
    %323 = vmatmul.bf16.gmra.mxu0 %v244
    %v324 = vpop.f32.mrf.mxu0
    %v325 = vadd.f32 %v250, %v324
    %v326 = vpop.f32.mrf.mxu0
    %v327 = vadd.f32 %v250, %v326
    %328 = vmatmul.bf16.gmra.mxu0 %v245
    %v329 = vpop.f32.mrf.mxu0
    %v330 = vadd.f32 %v250, %v329
    %v331 = vpop.f32.mrf.mxu0
    %v332 = vadd.f32 %v250, %v331
    %333 = vmatmul.bf16.gmra.mxu0 %v246
    %v334 = vpop.f32.mrf.mxu0
    %v335 = vadd.f32 %v250, %v334
    %v336 = vpop.f32.mrf.mxu0
    %v337 = vadd.f32 %v250, %v336
    %338 = vmatmul.bf16.gmra.mxu0 %v247
    %v339 = vpop.f32.mrf.mxu0
    %v340 = vadd.f32 %v250, %v339
    %v341 = vpop.f32.mrf.mxu0
    %v342 = vadd.f32 %v250, %v341
    %343 = vmatmul.bf16.gmra.mxu0 %v248
    %v344 = vpop.f32.mrf.mxu0
    %v345 = vadd.f32 %v250, %v344
    %v346 = vpop.f32.mrf.mxu0
    %v347 = vadd.f32 %v250, %v346
    %348 = vdwg.mxu0
    %349 = vmax.xlane.f32.xlu0 %v310
    %v350 = vpop.xlane.xlu0 %349
    %351 = vmax.xlane.f32.xlu0 %v312
    %v352 = vpop.xlane.xlu0 %351
    %353 = vmax.xlane.f32.xlu0 %v315
    %v354 = vpop.xlane.xlu0 %353
    %355 = vmax.xlane.f32.xlu0 %v317
    %v356 = vpop.xlane.xlu0 %355
    %357 = vmax.xlane.f32.xlu0 %v320
    %v358 = vpop.xlane.xlu0 %357
    %359 = vmax.xlane.f32.xlu0 %v322
    %v360 = vpop.xlane.xlu0 %359
    %361 = vmax.xlane.f32.xlu0 %v325
    %v362 = vpop.xlane.xlu0 %361
    %363 = vmax.xlane.f32.xlu0 %v327
    %v364 = vpop.xlane.xlu0 %363
    %365 = vmax.xlane.f32.xlu0 %v330
    %v366 = vpop.xlane.xlu0 %365
    %367 = vmax.xlane.f32.xlu0 %v332
    %v368 = vpop.xlane.xlu0 %367
    %369 = vmax.xlane.f32.xlu0 %v335
    %v370 = vpop.xlane.xlu0 %369
    %371 = vmax.xlane.f32.xlu0 %v337
    %v372 = vpop.xlane.xlu0 %371
    %373 = vmax.xlane.f32.xlu0 %v340
    %v374 = vpop.xlane.xlu0 %373
    %375 = vmax.xlane.f32.xlu0 %v342
    %v376 = vpop.xlane.xlu0 %375
    %377 = vmax.xlane.f32.xlu0 %v345
    %v378 = vpop.xlane.xlu0 %377
    %379 = vmax.xlane.f32.xlu0 %v347
    %v380 = vpop.xlane.xlu0 %379
    %v381 = vsub.f32 %v310, %v350
    %v382 = vsub.f32 %v312, %v352
    %v383 = vsub.f32 %v315, %v354
    %v384 = vsub.f32 %v317, %v356
    %v385 = vsub.f32 %v320, %v358
    %v386 = vsub.f32 %v322, %v360
    %v387 = vsub.f32 %v325, %v362
    %v388 = vsub.f32 %v327, %v364
    %v389 = vsub.f32 %v330, %v366
    %v390 = vsub.f32 %v332, %v368
    %v391 = vsub.f32 %v335, %v370
    %v392 = vsub.f32 %v337, %v372
    %v393 = vsub.f32 %v340, %v374
    %v394 = vsub.f32 %v342, %v376
    %v395 = vsub.f32 %v345, %v378
    %v396 = vsub.f32 %v347, %v380
    %v397 = vmul.f32 %v381, 1.442695
    %v398 = vpow.pop %v397
    %v399 = vmul.f32 %v382, 1.442695
    %v400 = vpow.pop %v399
    %v401 = vmul.f32 %v383, 1.442695
    %v402 = vpow.pop %v401
    %v403 = vmul.f32 %v384, 1.442695
    %v404 = vpow.pop %v403
    %v405 = vmul.f32 %v385, 1.442695
    %v406 = vpow.pop %v405
    %v407 = vmul.f32 %v386, 1.442695
    %v408 = vpow.pop %v407
    %v409 = vmul.f32 %v387, 1.442695
    %v410 = vpow.pop %v409
    %v411 = vmul.f32 %v388, 1.442695
    %v412 = vpow.pop %v411
    %v413 = vmul.f32 %v389, 1.442695
    %v414 = vpow.pop %v413
    %v415 = vmul.f32 %v390, 1.442695
    %v416 = vpow.pop %v415
    %v417 = vmul.f32 %v391, 1.442695
    %v418 = vpow.pop %v417
    %v419 = vmul.f32 %v392, 1.442695
    %v420 = vpow.pop %v419
    %v421 = vmul.f32 %v393, 1.442695
    %v422 = vpow.pop %v421
    %v423 = vmul.f32 %v394, 1.442695
    %v424 = vpow.pop %v423
    %v425 = vmul.f32 %v395, 1.442695
    %v426 = vpow.pop %v425
    %v427 = vmul.f32 %v396, 1.442695
    %v428 = vpow.pop %v427
    %429 = vadd.xlane.f32.xlu0 %v398
    %v430 = vpop.xlane.xlu0 %429
    %431 = vadd.xlane.f32.xlu0 %v400
    %v432 = vpop.xlane.xlu0 %431
    %433 = vadd.xlane.f32.xlu0 %v402
    %v434 = vpop.xlane.xlu0 %433
    %435 = vadd.xlane.f32.xlu0 %v404
    %v436 = vpop.xlane.xlu0 %435
    %437 = vadd.xlane.f32.xlu0 %v406
    %v438 = vpop.xlane.xlu0 %437
    %439 = vadd.xlane.f32.xlu0 %v408
    %v440 = vpop.xlane.xlu0 %439
    %441 = vadd.xlane.f32.xlu0 %v410
    %v442 = vpop.xlane.xlu0 %441
    %443 = vadd.xlane.f32.xlu0 %v412
    %v444 = vpop.xlane.xlu0 %443
    %445 = vadd.xlane.f32.xlu0 %v414
    %v446 = vpop.xlane.xlu0 %445
    %447 = vadd.xlane.f32.xlu0 %v416
    %v448 = vpop.xlane.xlu0 %447
    %449 = vadd.xlane.f32.xlu0 %v418
    %v450 = vpop.xlane.xlu0 %449
    %451 = vadd.xlane.f32.xlu0 %v420
    %v452 = vpop.xlane.xlu0 %451
    %453 = vadd.xlane.f32.xlu0 %v422
    %v454 = vpop.xlane.xlu0 %453
    %455 = vadd.xlane.f32.xlu0 %v424
    %v456 = vpop.xlane.xlu0 %455
    %457 = vadd.xlane.f32.xlu0 %v426
    %v458 = vpop.xlane.xlu0 %457
    %459 = vadd.xlane.f32.xlu0 %v428
    %v460 = vpop.xlane.xlu0 %459
    %v461 = vlog2.pop %v430
    %v462 = vmul.f32 %v461, 0.6931472
    %v463 = vlog2.pop %v432
    %v464 = vmul.f32 %v463, 0.6931472
    %v465 = vlog2.pop %v434
    %v466 = vmul.f32 %v465, 0.6931472
    %v467 = vlog2.pop %v436
    %v468 = vmul.f32 %v467, 0.6931472
    %v469 = vlog2.pop %v438
    %v470 = vmul.f32 %v469, 0.6931472
    %v471 = vlog2.pop %v440
    %v472 = vmul.f32 %v471, 0.6931472
    %v473 = vlog2.pop %v442
    %v474 = vmul.f32 %v473, 0.6931472
    %v475 = vlog2.pop %v444
    %v476 = vmul.f32 %v475, 0.6931472
    %v477 = vlog2.pop %v446
    %v478 = vmul.f32 %v477, 0.6931472
    %v479 = vlog2.pop %v448
    %v480 = vmul.f32 %v479, 0.6931472
    %v481 = vlog2.pop %v450
    %v482 = vmul.f32 %v481, 0.6931472
    %v483 = vlog2.pop %v452
    %v484 = vmul.f32 %v483, 0.6931472
    %v485 = vlog2.pop %v454
    %v486 = vmul.f32 %v485, 0.6931472
    %v487 = vlog2.pop %v456
    %v488 = vmul.f32 %v487, 0.6931472
    %v489 = vlog2.pop %v458
    %v490 = vmul.f32 %v489, 0.6931472
    %v491 = vlog2.pop %v460
    %v492 = vmul.f32 %v491, 0.6931472
    %v493 = vsub.f32 %v381, %v462
    %v494 = vsub.f32 %v382, %v464
    %v495 = vsub.f32 %v383, %v466
    %v496 = vsub.f32 %v384, %v468
    %v497 = vsub.f32 %v385, %v470
    %v498 = vsub.f32 %v386, %v472
    %v499 = vsub.f32 %v387, %v474
    %v500 = vsub.f32 %v388, %v476
    %v501 = vsub.f32 %v389, %v478
    %v502 = vsub.f32 %v390, %v480
    %v503 = vsub.f32 %v391, %v482
    %v504 = vsub.f32 %v392, %v484
    %v505 = vsub.f32 %v393, %v486
    %v506 = vsub.f32 %v394, %v488
    %v507 = vsub.f32 %v395, %v490
    %v508 = vsub.f32 %v396, %v492
    %v509 = vmax.f32 %v493, -16.118095
    %v510 = vmax.f32 %v494, -16.118095
    %v511 = vmax.f32 %v495, -16.118095
    %v512 = vmax.f32 %v496, -16.118095
    %v513 = vmax.f32 %v497, -16.118095
    %v514 = vmax.f32 %v498, -16.118095
    %v515 = vmax.f32 %v499, -16.118095
    %v516 = vmax.f32 %v500, -16.118095
    %v517 = vmax.f32 %v501, -16.118095
    %v518 = vmax.f32 %v502, -16.118095
    %v519 = vmax.f32 %v503, -16.118095
    %v520 = vmax.f32 %v504, -16.118095
    %v521 = vmax.f32 %v505, -16.118095
    %v522 = vmax.f32 %v506, -16.118095
    %v523 = vmax.f32 %v507, -16.118095
    %v524 = vmax.f32 %v508, -16.118095
    %v525 = vmin.f32 %v509, 0.0
    %v526 = vmin.f32 %v510, 0.0
    %v527 = vmin.f32 %v511, 0.0
    %v528 = vmin.f32 %v512, 0.0
    %v529 = vmin.f32 %v513, 0.0
    %v530 = vmin.f32 %v514, 0.0
    %v531 = vmin.f32 %v515, 0.0
    %v532 = vmin.f32 %v516, 0.0
    %v533 = vmin.f32 %v517, 0.0
    %v534 = vmin.f32 %v518, 0.0
    %v535 = vmin.f32 %v519, 0.0
    %v536 = vmin.f32 %v520, 0.0
    %v537 = vmin.f32 %v521, 0.0
    %v538 = vmin.f32 %v522, 0.0
    %v539 = vmin.f32 %v523, 0.0
    %v540 = vmin.f32 %v524, 0.0
    %v541 = vrcp.pop %v430
    %v542 = vmul.f32 %v430, %v541
    %v543 = vsub.f32 1.0, %v542
    %v544 = vmul.f32 %v541, %v543
    %v545 = vadd.f32 %v541, %v544
    %vm546 = vweird.f32 %v430
    %vm547 = vweird.f32 %v541
    %vm548 = vmor %vm546, %vm547
    %v549 = vsel %vm548, %v541, %v545
    %v550 = vand.u32 2147483647, %v430
    %vm551 = vcmp.eq.f32.partialorder %v550, 8.507059e+37
    %v552 = vand.u32 %v430, 2147483648
    %v553 = vor.u32 1.1754944e-38, %v552
    %v554 = vsel %vm551, %v553, %v549
    %v555 = vmul.f32 1.0, %v554
    %v556 = vrcp.pop %v432
    %v557 = vmul.f32 %v432, %v556
    %v558 = vsub.f32 1.0, %v557
    %v559 = vmul.f32 %v556, %v558
    %v560 = vadd.f32 %v556, %v559
    %vm561 = vweird.f32 %v432
    %vm562 = vweird.f32 %v556
    %vm563 = vmor %vm561, %vm562
    %v564 = vsel %vm563, %v556, %v560
    %v565 = vand.u32 2147483647, %v432
    %vm566 = vcmp.eq.f32.partialorder %v565, 8.507059e+37
    %v567 = vand.u32 %v432, 2147483648
    %v568 = vor.u32 1.1754944e-38, %v567
    %v569 = vsel %vm566, %v568, %v564
    %v570 = vmul.f32 1.0, %v569
    %v571 = vrcp.pop %v434
    %v572 = vmul.f32 %v434, %v571
    %v573 = vsub.f32 1.0, %v572
    %v574 = vmul.f32 %v571, %v573
    %v575 = vadd.f32 %v571, %v574
    %vm576 = vweird.f32 %v434
    %vm577 = vweird.f32 %v571
    %vm578 = vmor %vm576, %vm577
    %v579 = vsel %vm578, %v571, %v575
    %v580 = vand.u32 2147483647, %v434
    %vm581 = vcmp.eq.f32.partialorder %v580, 8.507059e+37
    %v582 = vand.u32 %v434, 2147483648
    %v583 = vor.u32 1.1754944e-38, %v582
    %v584 = vsel %vm581, %v583, %v579
    %v585 = vmul.f32 1.0, %v584
    %v586 = vrcp.pop %v436
    %v587 = vmul.f32 %v436, %v586
    %v588 = vsub.f32 1.0, %v587
    %v589 = vmul.f32 %v586, %v588
    %v590 = vadd.f32 %v586, %v589
    %vm591 = vweird.f32 %v436
    %vm592 = vweird.f32 %v586
    %vm593 = vmor %vm591, %vm592
    %v594 = vsel %vm593, %v586, %v590
    %v595 = vand.u32 2147483647, %v436
    %vm596 = vcmp.eq.f32.partialorder %v595, 8.507059e+37
    %v597 = vand.u32 %v436, 2147483648
    %v598 = vor.u32 1.1754944e-38, %v597
    %v599 = vsel %vm596, %v598, %v594
    %v600 = vmul.f32 1.0, %v599
    %v601 = vrcp.pop %v438
    %v602 = vmul.f32 %v438, %v601
    %v603 = vsub.f32 1.0, %v602
    %v604 = vmul.f32 %v601, %v603
    %v605 = vadd.f32 %v601, %v604
    %vm606 = vweird.f32 %v438
    %vm607 = vweird.f32 %v601
    %vm608 = vmor %vm606, %vm607
    %v609 = vsel %vm608, %v601, %v605
    %v610 = vand.u32 2147483647, %v438
    %vm611 = vcmp.eq.f32.partialorder %v610, 8.507059e+37
    %v612 = vand.u32 %v438, 2147483648
    %v613 = vor.u32 1.1754944e-38, %v612
    %v614 = vsel %vm611, %v613, %v609
    %v615 = vmul.f32 1.0, %v614
    %v616 = vrcp.pop %v440
    %v617 = vmul.f32 %v440, %v616
    %v618 = vsub.f32 1.0, %v617
    %v619 = vmul.f32 %v616, %v618
    %v620 = vadd.f32 %v616, %v619
    %vm621 = vweird.f32 %v440
    %vm622 = vweird.f32 %v616
    %vm623 = vmor %vm621, %vm622
    %v624 = vsel %vm623, %v616, %v620
    %v625 = vand.u32 2147483647, %v440
    %vm626 = vcmp.eq.f32.partialorder %v625, 8.507059e+37
    %v627 = vand.u32 %v440, 2147483648
    %v628 = vor.u32 1.1754944e-38, %v627
    %v629 = vsel %vm626, %v628, %v624
    %v630 = vmul.f32 1.0, %v629
    %v631 = vrcp.pop %v442
    %v632 = vmul.f32 %v442, %v631
    %v633 = vsub.f32 1.0, %v632
    %v634 = vmul.f32 %v631, %v633
    %v635 = vadd.f32 %v631, %v634
    %vm636 = vweird.f32 %v442
    %vm637 = vweird.f32 %v631
    %vm638 = vmor %vm636, %vm637
    %v639 = vsel %vm638, %v631, %v635
    %v640 = vand.u32 2147483647, %v442
    %vm641 = vcmp.eq.f32.partialorder %v640, 8.507059e+37
    %v642 = vand.u32 %v442, 2147483648
    %v643 = vor.u32 1.1754944e-38, %v642
    %v644 = vsel %vm641, %v643, %v639
    %v645 = vmul.f32 1.0, %v644
    %v646 = vrcp.pop %v444
    %v647 = vmul.f32 %v444, %v646
    %v648 = vsub.f32 1.0, %v647
    %v649 = vmul.f32 %v646, %v648
    %v650 = vadd.f32 %v646, %v649
    %vm651 = vweird.f32 %v444
    %vm652 = vweird.f32 %v646
    %vm653 = vmor %vm651, %vm652
    %v654 = vsel %vm653, %v646, %v650
    %v655 = vand.u32 2147483647, %v444
    %vm656 = vcmp.eq.f32.partialorder %v655, 8.507059e+37
    %v657 = vand.u32 %v444, 2147483648
    %v658 = vor.u32 1.1754944e-38, %v657
    %v659 = vsel %vm656, %v658, %v654
    %v660 = vmul.f32 1.0, %v659
    %v661 = vrcp.pop %v446
    %v662 = vmul.f32 %v446, %v661
    %v663 = vsub.f32 1.0, %v662
    %v664 = vmul.f32 %v661, %v663
    %v665 = vadd.f32 %v661, %v664
    %vm666 = vweird.f32 %v446
    %vm667 = vweird.f32 %v661
    %vm668 = vmor %vm666, %vm667
    %v669 = vsel %vm668, %v661, %v665
    %v670 = vand.u32 2147483647, %v446
    %vm671 = vcmp.eq.f32.partialorder %v670, 8.507059e+37
    %v672 = vand.u32 %v446, 2147483648
    %v673 = vor.u32 1.1754944e-38, %v672
    %v674 = vsel %vm671, %v673, %v669
    %v675 = vmul.f32 1.0, %v674
    %v676 = vrcp.pop %v448
    %v677 = vmul.f32 %v448, %v676
    %v678 = vsub.f32 1.0, %v677
    %v679 = vmul.f32 %v676, %v678
    %v680 = vadd.f32 %v676, %v679
    %vm681 = vweird.f32 %v448
    %vm682 = vweird.f32 %v676
    %vm683 = vmor %vm681, %vm682
    %v684 = vsel %vm683, %v676, %v680
    %v685 = vand.u32 2147483647, %v448
    %vm686 = vcmp.eq.f32.partialorder %v685, 8.507059e+37
    %v687 = vand.u32 %v448, 2147483648
    %v688 = vor.u32 1.1754944e-38, %v687
    %v689 = vsel %vm686, %v688, %v684
    %v690 = vmul.f32 1.0, %v689
    %v691 = vrcp.pop %v450
    %v692 = vmul.f32 %v450, %v691
    %v693 = vsub.f32 1.0, %v692
    %v694 = vmul.f32 %v691, %v693
    %v695 = vadd.f32 %v691, %v694
    %vm696 = vweird.f32 %v450
    %vm697 = vweird.f32 %v691
    %vm698 = vmor %vm696, %vm697
    %v699 = vsel %vm698, %v691, %v695
    %v700 = vand.u32 2147483647, %v450
    %vm701 = vcmp.eq.f32.partialorder %v700, 8.507059e+37
    %v702 = vand.u32 %v450, 2147483648
    %v703 = vor.u32 1.1754944e-38, %v702
    %v704 = vsel %vm701, %v703, %v699
    %v705 = vmul.f32 1.0, %v704
    %v706 = vrcp.pop %v452
    %v707 = vmul.f32 %v452, %v706
    %v708 = vsub.f32 1.0, %v707
    %v709 = vmul.f32 %v706, %v708
    %v710 = vadd.f32 %v706, %v709
    %vm711 = vweird.f32 %v452
    %vm712 = vweird.f32 %v706
    %vm713 = vmor %vm711, %vm712
    %v714 = vsel %vm713, %v706, %v710
    %v715 = vand.u32 2147483647, %v452
    %vm716 = vcmp.eq.f32.partialorder %v715, 8.507059e+37
    %v717 = vand.u32 %v452, 2147483648
    %v718 = vor.u32 1.1754944e-38, %v717
    %v719 = vsel %vm716, %v718, %v714
    %v720 = vmul.f32 1.0, %v719
    %v721 = vrcp.pop %v454
    %v722 = vmul.f32 %v454, %v721
    %v723 = vsub.f32 1.0, %v722
    %v724 = vmul.f32 %v721, %v723
    %v725 = vadd.f32 %v721, %v724
    %vm726 = vweird.f32 %v454
    %vm727 = vweird.f32 %v721
    %vm728 = vmor %vm726, %vm727
    %v729 = vsel %vm728, %v721, %v725
    %v730 = vand.u32 2147483647, %v454
    %vm731 = vcmp.eq.f32.partialorder %v730, 8.507059e+37
    %v732 = vand.u32 %v454, 2147483648
    %v733 = vor.u32 1.1754944e-38, %v732
    %v734 = vsel %vm731, %v733, %v729
    %v735 = vmul.f32 1.0, %v734
    %v736 = vrcp.pop %v456
    %v737 = vmul.f32 %v456, %v736
    %v738 = vsub.f32 1.0, %v737
    %v739 = vmul.f32 %v736, %v738
    %v740 = vadd.f32 %v736, %v739
    %vm741 = vweird.f32 %v456
    %vm742 = vweird.f32 %v736
    %vm743 = vmor %vm741, %vm742
    %v744 = vsel %vm743, %v736, %v740
    %v745 = vand.u32 2147483647, %v456
    %vm746 = vcmp.eq.f32.partialorder %v745, 8.507059e+37
    %v747 = vand.u32 %v456, 2147483648
    %v748 = vor.u32 1.1754944e-38, %v747
    %v749 = vsel %vm746, %v748, %v744
    %v750 = vmul.f32 1.0, %v749
    %v751 = vrcp.pop %v458
    %v752 = vmul.f32 %v458, %v751
    %v753 = vsub.f32 1.0, %v752
    %v754 = vmul.f32 %v751, %v753
    %v755 = vadd.f32 %v751, %v754
    %vm756 = vweird.f32 %v458
    %vm757 = vweird.f32 %v751
    %vm758 = vmor %vm756, %vm757
    %v759 = vsel %vm758, %v751, %v755
    %v760 = vand.u32 2147483647, %v458
    %vm761 = vcmp.eq.f32.partialorder %v760, 8.507059e+37
    %v762 = vand.u32 %v458, 2147483648
    %v763 = vor.u32 1.1754944e-38, %v762
    %v764 = vsel %vm761, %v763, %v759
    %v765 = vmul.f32 1.0, %v764
    %v766 = vrcp.pop %v460
    %v767 = vmul.f32 %v460, %v766
    %v768 = vsub.f32 1.0, %v767
    %v769 = vmul.f32 %v766, %v768
    %v770 = vadd.f32 %v766, %v769
    %vm771 = vweird.f32 %v460
    %vm772 = vweird.f32 %v766
    %vm773 = vmor %vm771, %vm772
    %v774 = vsel %vm773, %v766, %v770
    %v775 = vand.u32 2147483647, %v460
    %vm776 = vcmp.eq.f32.partialorder %v775, 8.507059e+37
    %v777 = vand.u32 %v460, 2147483648
    %v778 = vor.u32 1.1754944e-38, %v777
    %v779 = vsel %vm776, %v778, %v774
    %v780 = vmul.f32 1.0, %v779
    %v781 = vmul.f32 %v398, %v555
    %v782 = vmul.f32 %v400, %v570
    %v783 = vmul.f32 %v402, %v585
    %v784 = vmul.f32 %v404, %v600
    %v785 = vmul.f32 %v406, %v615
    %v786 = vmul.f32 %v408, %v630
    %v787 = vmul.f32 %v410, %v645
    %v788 = vmul.f32 %v412, %v660
    %v789 = vmul.f32 %v414, %v675
    %v790 = vmul.f32 %v416, %v690
    %v791 = vmul.f32 %v418, %v705
    %v792 = vmul.f32 %v420, %v720
    %v793 = vmul.f32 %v422, %v735
    %v794 = vmul.f32 %v424, %v750
    %v795 = vmul.f32 %v426, %v765
    %v796 = vmul.f32 %v428, %v780
    %v797 = vmax.f32 %v781, 1e-07
    %v798 = vmax.f32 %v782, 1e-07
    %v799 = vmax.f32 %v783, 1e-07
    %v800 = vmax.f32 %v784, 1e-07
    %v801 = vmax.f32 %v785, 1e-07
    %v802 = vmax.f32 %v786, 1e-07
    %v803 = vmax.f32 %v787, 1e-07
    %v804 = vmax.f32 %v788, 1e-07
    %v805 = vmax.f32 %v789, 1e-07
    %v806 = vmax.f32 %v790, 1e-07
    %v807 = vmax.f32 %v791, 1e-07
    %v808 = vmax.f32 %v792, 1e-07
    %v809 = vmax.f32 %v793, 1e-07
    %v810 = vmax.f32 %v794, 1e-07
    %v811 = vmax.f32 %v795, 1e-07
    %v812 = vmax.f32 %v796, 1e-07
    %v813 = vmin.f32 %v797, 1.0
    %v814 = vmin.f32 %v798, 1.0
    %v815 = vmin.f32 %v799, 1.0
    %v816 = vmin.f32 %v800, 1.0
    %v817 = vmin.f32 %v801, 1.0
    %v818 = vmin.f32 %v802, 1.0
    %v819 = vmin.f32 %v803, 1.0
    %v820 = vmin.f32 %v804, 1.0
    %v821 = vmin.f32 %v805, 1.0
    %v822 = vmin.f32 %v806, 1.0
    %v823 = vmin.f32 %v807, 1.0
    %v824 = vmin.f32 %v808, 1.0
    %v825 = vmin.f32 %v809, 1.0
    %v826 = vmin.f32 %v810, 1.0
    %v827 = vmin.f32 %v811, 1.0
    %v828 = vmin.f32 %v812, 1.0
    %829 = vst [vmem:[#allocation2] sm:$0xff] %v813
    %830 = vst [vmem:[#allocation2 + $0x8] sm:$0xff] %v814
    %831 = vst [vmem:[#allocation2 + $0x10] sm:$0xff] %v815
    %832 = vst [vmem:[#allocation2 + $0x18] sm:$0xff] %v816
    %833 = vst [vmem:[#allocation2 + $0x20] sm:$0xff] %v817
    %834 = vst [vmem:[#allocation2 + $0x28] sm:$0xff] %v818
    %835 = vst [vmem:[#allocation2 + $0x30] sm:$0xff] %v819
    %836 = vst [vmem:[#allocation2 + $0x38] sm:$0xff] %v820
    %837 = vst [vmem:[#allocation2 + $0x40] sm:$0xff] %v821
    %838 = vst [vmem:[#allocation2 + $0x48] sm:$0xff] %v822
    %839 = vst [vmem:[#allocation2 + $0x50] sm:$0xff] %v823
    %840 = vst [vmem:[#allocation2 + $0x58] sm:$0xff] %v824
    %841 = vst [vmem:[#allocation2 + $0x60] sm:$0xff] %v825
    %842 = vst [vmem:[#allocation2 + $0x68] sm:$0xff] %v826
    %843 = vst [vmem:[#allocation2 + $0x70] sm:$0xff] %v827
    %844 = vst [vmem:[#allocation2 + $0x78] sm:$0xff] %v828
    %v845 = vmul.f32 %v813, %v525
    %v846 = vmul.f32 %v814, %v526
    %v847 = vmul.f32 %v815, %v527
    %v848 = vmul.f32 %v816, %v528
    %v849 = vmul.f32 %v817, %v529
    %v850 = vmul.f32 %v818, %v530
    %v851 = vmul.f32 %v819, %v531
    %v852 = vmul.f32 %v820, %v532
    %v853 = vmul.f32 %v821, %v533
    %v854 = vmul.f32 %v822, %v534
    %v855 = vmul.f32 %v823, %v535
    %v856 = vmul.f32 %v824, %v536
    %v857 = vmul.f32 %v825, %v537
    %v858 = vmul.f32 %v826, %v538
    %v859 = vmul.f32 %v827, %v539
    %v860 = vmul.f32 %v828, %v540
    %861 = vadd.xlane.f32.xlu0 %v845
    %v862 = vpop.xlane.xlu0 %861
    %863 = vadd.xlane.f32.xlu0 %v846
    %v864 = vpop.xlane.xlu0 %863
    %865 = vadd.xlane.f32.xlu0 %v847
    %v866 = vpop.xlane.xlu0 %865
    %867 = vadd.xlane.f32.xlu0 %v848
    %v868 = vpop.xlane.xlu0 %867
    %869 = vadd.xlane.f32.xlu0 %v849
    %v870 = vpop.xlane.xlu0 %869
    %871 = vadd.xlane.f32.xlu0 %v850
    %v872 = vpop.xlane.xlu0 %871
    %873 = vadd.xlane.f32.xlu0 %v851
    %v874 = vpop.xlane.xlu0 %873
    %875 = vadd.xlane.f32.xlu0 %v852
    %v876 = vpop.xlane.xlu0 %875
    %877 = vadd.xlane.f32.xlu0 %v853
    %v878 = vpop.xlane.xlu0 %877
    %879 = vadd.xlane.f32.xlu0 %v854
    %v880 = vpop.xlane.xlu0 %879
    %881 = vadd.xlane.f32.xlu0 %v855
    %v882 = vpop.xlane.xlu0 %881
    %883 = vadd.xlane.f32.xlu0 %v856
    %v884 = vpop.xlane.xlu0 %883
    %885 = vadd.xlane.f32.xlu0 %v857
    %v886 = vpop.xlane.xlu0 %885
    %887 = vadd.xlane.f32.xlu0 %v858
    %v888 = vpop.xlane.xlu0 %887
    %889 = vadd.xlane.f32.xlu0 %v859
    %v890 = vpop.xlane.xlu0 %889
    %891 = vadd.xlane.f32.xlu0 %v860
    %v892 = vpop.xlane.xlu0 %891
    %vm893 = vcmask 7168
    %894 = vst.msk [vmem:[#allocation3] sm:$0xff] %vm893, %v862
    %895 = vst.msk [vmem:[#allocation3 + $0x8] sm:$0xff] %vm893, %v864
    %896 = vst.msk [vmem:[#allocation3 + $0x10] sm:$0xff] %vm893, %v866
    %897 = vst.msk [vmem:[#allocation3 + $0x18] sm:$0xff] %vm893, %v868
    %898 = vst.msk [vmem:[#allocation3 + $0x20] sm:$0xff] %vm893, %v870
    %899 = vst.msk [vmem:[#allocation3 + $0x28] sm:$0xff] %vm893, %v872
    %900 = vst.msk [vmem:[#allocation3 + $0x30] sm:$0xff] %vm893, %v874
    %901 = vst.msk [vmem:[#allocation3 + $0x38] sm:$0xff] %vm893, %v876
    %902 = vst.msk [vmem:[#allocation3 + $0x40] sm:$0xff] %vm893, %v878
    %903 = vst.msk [vmem:[#allocation3 + $0x48] sm:$0xff] %vm893, %v880
    %904 = vst.msk [vmem:[#allocation3 + $0x50] sm:$0xff] %vm893, %v882
    %905 = vst.msk [vmem:[#allocation3 + $0x58] sm:$0xff] %vm893, %v884
    %906 = vst.msk [vmem:[#allocation3 + $0x60] sm:$0xff] %vm893, %v886
    %907 = vst.msk [vmem:[#allocation3 + $0x68] sm:$0xff] %vm893, %v888
    %908 = vst.msk [vmem:[#allocation3 + $0x70] sm:$0xff] %vm893, %v890
    %909 = vst.msk [vmem:[#allocation3 + $0x78] sm:$0xff] %vm893, %v892
  $region29: #{pseudo_attention.3} parent=0 // pred_fallthru
    _
  %v910 = vld [vmem:[#allocation2] sm:$0xff]
  %v911 = vld [vmem:[#allocation2 + $0x8] sm:$0xff]
  %v912 = vld [vmem:[#allocation2 + $0x10] sm:$0xff]
  %v913 = vld [vmem:[#allocation2 + $0x18] sm:$0xff]
  %v914 = vld [vmem:[#allocation2 + $0x20] sm:$0xff]
  %v915 = vld [vmem:[#allocation2 + $0x28] sm:$0xff]
  %v916 = vld [vmem:[#allocation2 + $0x30] sm:$0xff]
  %v917 = vld [vmem:[#allocation2 + $0x38] sm:$0xff]
  %v918 = vld [vmem:[#allocation2 + $0x40] sm:$0xff]
  %v919 = vld [vmem:[#allocation2 + $0x48] sm:$0xff]
  %v920 = vld [vmem:[#allocation2 + $0x50] sm:$0xff]
  %v921 = vld [vmem:[#allocation2 + $0x58] sm:$0xff]
  %v922 = vld [vmem:[#allocation2 + $0x60] sm:$0xff]
  %v923 = vld [vmem:[#allocation2 + $0x68] sm:$0xff]
  %v924 = vld [vmem:[#allocation2 + $0x70] sm:$0xff]
  %v925 = vld [vmem:[#allocation2 + $0x78] sm:$0xff]
  %v926 = vld [vmem:[%s5] sm:$0xff]
  %v927 = vld [vmem:[%s5 + $0x8] sm:$0xff]
  %v928 = vld [vmem:[%s5 + $0x10] sm:$0xff]
  %v929 = vld [vmem:[%s5 + $0x18] sm:$0xff]
  %v930 = vld [vmem:[%s5 + $0x20] sm:$0xff]
  %v931 = vld [vmem:[%s5 + $0x28] sm:$0xff]
  %v932 = vld [vmem:[%s5 + $0x30] sm:$0xff]
  %v933 = vld [vmem:[%s5 + $0x38] sm:$0xff]
  %v934 = vld [vmem:[%s5 + $0x40] sm:$0xff]
  %v935 = vld [vmem:[%s5 + $0x48] sm:$0xff]
  %v936 = vld [vmem:[%s5 + $0x50] sm:$0xff]
  %v937 = vld [vmem:[%s5 + $0x58] sm:$0xff]
  %v938 = vld [vmem:[%s5 + $0x60] sm:$0xff]
  %v939 = vld [vmem:[%s5 + $0x68] sm:$0xff]
  %v940 = vld [vmem:[%s5 + $0x70] sm:$0xff]
  %v941 = vld [vmem:[%s5 + $0x78] sm:$0xff]
  %942 = vmatpush.xpose.msra.mxu0 %v941
  %943 = vmatpush.xpose.msra.mxu0 %v940
  %944 = vmatpush.xpose.msra.mxu0 %v939
  %945 = vmatpush.xpose.msra.mxu0 %v938
  %946 = vmatpush.xpose.msra.mxu0 %v937
  %947 = vmatpush.xpose.msra.mxu0 %v936
  %948 = vmatpush.xpose.msra.mxu0 %v935
  %949 = vmatpush.xpose.msra.mxu0 %v934
  %950 = vmatpush.xpose.msra.mxu0 %v933
  %951 = vmatpush.xpose.msra.mxu0 %v932
  %952 = vmatpush.xpose.msra.mxu0 %v931
  %953 = vmatpush.xpose.msra.mxu0 %v930
  %954 = vmatpush.xpose.msra.mxu0 %v929
  %955 = vmatpush.xpose.msra.mxu0 %v928
  %956 = vmatpush.xpose.msra.mxu0 %v927
  %957 = vmatpush.xpose.msra.mxu0 %v926
  %958 = vmatmul.f32.gmra.mxu0 %v910
  %v959 = vpop.f32.mrf.mxu0
  %v960 = vadd.f32 0.0, %v959
  %961 = vmatmul.f32.gmra.mxu0 %v911
  %v962 = vpop.f32.mrf.mxu0
  %v963 = vadd.f32 0.0, %v962
  %964 = vmatmul.f32.gmra.mxu0 %v912
  %v965 = vpop.f32.mrf.mxu0
  %v966 = vadd.f32 0.0, %v965
  %967 = vmatmul.f32.gmra.mxu0 %v913
  %v968 = vpop.f32.mrf.mxu0
  %v969 = vadd.f32 0.0, %v968
  %970 = vmatmul.f32.gmra.mxu0 %v914
  %v971 = vpop.f32.mrf.mxu0
  %v972 = vadd.f32 0.0, %v971
  %973 = vmatmul.f32.gmra.mxu0 %v915
  %v974 = vpop.f32.mrf.mxu0
  %v975 = vadd.f32 0.0, %v974
  %976 = vmatmul.f32.gmra.mxu0 %v916
  %v977 = vpop.f32.mrf.mxu0
  %v978 = vadd.f32 0.0, %v977
  %979 = vmatmul.f32.gmra.mxu0 %v917
  %v980 = vpop.f32.mrf.mxu0
  %v981 = vadd.f32 0.0, %v980
  %982 = vmatmul.f32.gmra.mxu0 %v918
  %v983 = vpop.f32.mrf.mxu0
  %v984 = vadd.f32 0.0, %v983
  %985 = vmatmul.f32.gmra.mxu0 %v919
  %v986 = vpop.f32.mrf.mxu0
  %v987 = vadd.f32 0.0, %v986
  %988 = vmatmul.f32.gmra.mxu0 %v920
  %v989 = vpop.f32.mrf.mxu0
  %v990 = vadd.f32 0.0, %v989
  %991 = vmatmul.f32.gmra.mxu0 %v921
  %v992 = vpop.f32.mrf.mxu0
  %v993 = vadd.f32 0.0, %v992
  %994 = vmatmul.f32.gmra.mxu0 %v922
  %v995 = vpop.f32.mrf.mxu0
  %v996 = vadd.f32 0.0, %v995
  %997 = vmatmul.f32.gmra.mxu0 %v923
  %v998 = vpop.f32.mrf.mxu0
  %v999 = vadd.f32 0.0, %v998
  %1000 = vmatmul.f32.gmra.mxu0 %v924
  %v1001 = vpop.f32.mrf.mxu0
  %v1002 = vadd.f32 0.0, %v1001
  %1003 = vmatmul.f32.gmra.mxu0 %v925
  %v1004 = vpop.f32.mrf.mxu0
  %v1005 = vadd.f32 0.0, %v1004
  %1006 = vdwg.mxu0
  %v1007 = vld [vmem:[#allocation3] sm:$0xff]
  %v1008 = vld [vmem:[#allocation3 + $0x8] sm:$0xff]
  %v1009 = vld [vmem:[#allocation3 + $0x10] sm:$0xff]
  %v1010 = vld [vmem:[#allocation3 + $0x18] sm:$0xff]
  %v1011 = vld [vmem:[#allocation3 + $0x20] sm:$0xff]
  %v1012 = vld [vmem:[#allocation3 + $0x28] sm:$0xff]
  %v1013 = vld [vmem:[#allocation3 + $0x30] sm:$0xff]
  %v1014 = vld [vmem:[#allocation3 + $0x38] sm:$0xff]
  %v1015 = vld [vmem:[#allocation3 + $0x40] sm:$0xff]
  %v1016 = vld [vmem:[#allocation3 + $0x48] sm:$0xff]
  %v1017 = vld [vmem:[#allocation3 + $0x50] sm:$0xff]
  %v1018 = vld [vmem:[#allocation3 + $0x58] sm:$0xff]
  %v1019 = vld [vmem:[#allocation3 + $0x60] sm:$0xff]
  %v1020 = vld [vmem:[#allocation3 + $0x68] sm:$0xff]
  %v1021 = vld [vmem:[#allocation3 + $0x70] sm:$0xff]
  %v1022 = vld [vmem:[#allocation3 + $0x78] sm:$0xff]
  %1024 = vset.pattern.permute.xlu0 0
  %1025 = vperm.xlu0 %1024, %v1007
  %v1026 = vpop.permute.xlu0 %1025
  %1029 = vset.pattern.permute.xlu0 0
  %1030 = vperm.xlu0 %1029, %v1008
  %v1031 = vpop.permute.xlu0 %1030
  %1034 = vset.pattern.permute.xlu0 0
  %1035 = vperm.xlu0 %1034, %v1009
  %v1036 = vpop.permute.xlu0 %1035
  %1039 = vset.pattern.permute.xlu0 0
  %1040 = vperm.xlu0 %1039, %v1010
  %v1041 = vpop.permute.xlu0 %1040
  %1044 = vset.pattern.permute.xlu0 0
  %1045 = vperm.xlu0 %1044, %v1011
  %v1046 = vpop.permute.xlu0 %1045
  %1049 = vset.pattern.permute.xlu0 0
  %1050 = vperm.xlu0 %1049, %v1012
  %v1051 = vpop.permute.xlu0 %1050
  %1054 = vset.pattern.permute.xlu0 0
  %1055 = vperm.xlu0 %1054, %v1013
  %v1056 = vpop.permute.xlu0 %1055
  %1059 = vset.pattern.permute.xlu0 0
  %1060 = vperm.xlu0 %1059, %v1014
  %v1061 = vpop.permute.xlu0 %1060
  %1064 = vset.pattern.permute.xlu0 0
  %1065 = vperm.xlu0 %1064, %v1015
  %v1066 = vpop.permute.xlu0 %1065
  %1069 = vset.pattern.permute.xlu0 0
  %1070 = vperm.xlu0 %1069, %v1016
  %v1071 = vpop.permute.xlu0 %1070
  %1074 = vset.pattern.permute.xlu0 0
  %1075 = vperm.xlu0 %1074, %v1017
  %v1076 = vpop.permute.xlu0 %1075
  %1079 = vset.pattern.permute.xlu0 0
  %1080 = vperm.xlu0 %1079, %v1018
  %v1081 = vpop.permute.xlu0 %1080
  %1084 = vset.pattern.permute.xlu0 0
  %1085 = vperm.xlu0 %1084, %v1019
  %v1086 = vpop.permute.xlu0 %1085
  %1089 = vset.pattern.permute.xlu0 0
  %1090 = vperm.xlu0 %1089, %v1020
  %v1091 = vpop.permute.xlu0 %1090
  %1094 = vset.pattern.permute.xlu0 0
  %1095 = vperm.xlu0 %1094, %v1021
  %v1096 = vpop.permute.xlu0 %1095
  %1099 = vset.pattern.permute.xlu0 0
  %1100 = vperm.xlu0 %1099, %v1022
  %v1101 = vpop.permute.xlu0 %1100
  %v1103 = vsub.f32 %v960, %v1026
  %v1104 = vsub.f32 %v963, %v1031
  %v1105 = vsub.f32 %v966, %v1036
  %v1106 = vsub.f32 %v969, %v1041
  %v1107 = vsub.f32 %v972, %v1046
  %v1108 = vsub.f32 %v975, %v1051
  %v1109 = vsub.f32 %v978, %v1056
  %v1110 = vsub.f32 %v981, %v1061
  %v1111 = vsub.f32 %v984, %v1066
  %v1112 = vsub.f32 %v987, %v1071
  %v1113 = vsub.f32 %v990, %v1076
  %v1114 = vsub.f32 %v993, %v1081
  %v1115 = vsub.f32 %v996, %v1086
  %v1116 = vsub.f32 %v999, %v1091
  %v1117 = vsub.f32 %v1002, %v1096
  %v1118 = vsub.f32 %v1005, %v1101
  %1119 = vst [vmem:[%s6] sm:$0xff] %v1103
  %1120 = vst [vmem:[%s6 + $0x8] sm:$0xff] %v1104
  %1121 = vst [vmem:[%s6 + $0x10] sm:$0xff] %v1105
  %1122 = vst [vmem:[%s6 + $0x18] sm:$0xff] %v1106
  %1123 = vst [vmem:[%s6 + $0x20] sm:$0xff] %v1107
  %1124 = vst [vmem:[%s6 + $0x28] sm:$0xff] %v1108
  %1125 = vst [vmem:[%s6 + $0x30] sm:$0xff] %v1109
  %1126 = vst [vmem:[%s6 + $0x38] sm:$0xff] %v1110
  %1127 = vst [vmem:[%s6 + $0x40] sm:$0xff] %v1111
  %1128 = vst [vmem:[%s6 + $0x48] sm:$0xff] %v1112
  %1129 = vst [vmem:[%s6 + $0x50] sm:$0xff] %v1113
  %1130 = vst [vmem:[%s6 + $0x58] sm:$0xff] %v1114
  %1131 = vst [vmem:[%s6 + $0x60] sm:$0xff] %v1115
  %1132 = vst [vmem:[%s6 + $0x68] sm:$0xff] %v1116
  %1133 = vst [vmem:[%s6 + $0x70] sm:$0xff] %v1117
  %1134 = vst [vmem:[%s6 + $0x78] sm:$0xff] %v1118
  // Predicated region
  $region30: #{pseudo_attention.3} parent=0 // pred_check
    _
  $region31: #{pseudo_attention.3} parent=0 // pred_check_branch
    %1136 = sbr.rel (0) target = $region33
  $region32: #{pseudo_attention.3} parent=0 // pred_region
    _
  $region33: #{pseudo_attention.3} parent=0 // pred_fallthru
    _
  // Predicated region
  $region34: #{pseudo_attention.3} parent=0 // pred_check
    _
  $region35: #{pseudo_attention.3} parent=0 // pred_check_branch
    %1138 = sbr.rel (0) target = $region37
  $region36: #{pseudo_attention.3} parent=0 // pred_region
    _
  $region37: #{pseudo_attention.3} parent=0 // pred_fallthru
    _

</llo_original>
